<compile_context>
chip_gen: v5e
topology: v5e:2x2
jax: 0.10.0
libtpu: 0.0.40
codegen_flags: <defaults>
</compile_context>

<pallas_src>
import functools

import jax
import jax.numpy as jnp
import numpy as np
from jax import lax
from jax.experimental import pallas as pl
from jax.experimental.pallas import tpu as pltpu

IN_DIM = 1
HID = 40
OUT_DIM = 1

HID_P = 128                   # hidden padded to one full lane width
VEC_ROWS = 8                  # sublane-aligned row block holding the 1-D params
P_ROWS = HID_P + VEC_ROWS     # packed parameter slab rows (136)

# Row offsets of the 1-D params inside the trailing (8, 128) block of the slab.
_A1_ROW, _B1_ROW, _B2_ROW, _A3_ROW, _B3_ROW = 0, 1, 2, 3, 4


def pack_params(params):
    """Pack (A1,b1,A2,b2,A3,b3) into one zero-padded (136, 128) f32 slab."""
    A1, b1, A2, b2, A3, b3 = params
    slab = jnp.zeros((P_ROWS, HID_P), jnp.float32)
    slab = slab.at[0:HID, 0:HID].set(A2.astype(jnp.float32))
    slab = slab.at[HID_P + _A1_ROW, 0:HID].set(A1[0].astype(jnp.float32))
    slab = slab.at[HID_P + _B1_ROW, 0:HID].set(b1[0].astype(jnp.float32))
    slab = slab.at[HID_P + _B2_ROW, 0:HID].set(b2[0].astype(jnp.float32))
    slab = slab.at[HID_P + _A3_ROW, 0:HID].set(A3[:, 0].astype(jnp.float32))
    slab = slab.at[HID_P + _B3_ROW, 0].set(b3[0, 0].astype(jnp.float32))
    return slab


def maml_kernel(xs_ref, ys_ref, xq_ref, p_ref, out_ref, *,
                inner_iters, gd_lr, temperature):
    # Per-task blocks are (1, K, 1) / (1, Q, 1); squeeze the task axis.
    xs = xs_ref[0]            # (K, 1)
    ys = ys_ref[0]            # (K, 1)
    xq = xq_ref[0]            # (Q, 1)

    # Packed parameter slab (shared across tasks; constant block index -> the
    # pipeline DMAs it only once for the whole grid).
    A2 = p_ref[0:HID_P, :]                       # (128,128), zero outside [0:40,0:40]
    vecs = p_ref[HID_P:HID_P + VEC_ROWS, :]      # (8, 128)
    A1r = vecs[_A1_ROW:_A1_ROW + 1, :]           # (1, 128) Linear(1,40) weight row
    b1 = vecs[_B1_ROW:_B1_ROW + 1, :]            # (1, 128)
    b2 = vecs[_B2_ROW:_B2_ROW + 1, :]            # (1, 128)
    A3r = vecs[_A3_ROW:_A3_ROW + 1, :]           # (1, 128) Linear(40,1) weight row
    b3 = vecs[_B3_ROW:_B3_ROW + 1, 0:1]          # (1, 1)

    inv_n = 2.0 / float(xs.shape[0] * OUT_DIM)   # MSE 'mean' reduction factor
    inv_t = 1.0 / temperature

    def fwd(x, A1r, b1, A2, b2, A3r, b3):
        # Layer 1 (in_dim=1): outer product -> VPU broadcast multiply, no MXU.
        z1 = x * A1r + b1                                      # (B, 128)
        h1 = jnp.maximum(z1, 0.0)
        # Layer 2 (dense after padding): single MXU pass.
        z2 = jnp.dot(h1, A2, preferred_element_type=jnp.float32) + b2
        h2 = jnp.maximum(z2, 0.0)
        # Layer 3 (out_dim=1): weighted cross-lane sum (XLU), no MXU.
        y = jnp.sum(h2 * A3r, axis=1, keepdims=True) + b3      # (B, 1)
        return z1, h1, z2, h2, y

    # Inner-loop adaptation (first_order=True -> plain SGD on analytic grads).
    # TODO(synk): torch.autograd.grad has no Pallas equivalent; backprop through
    # the fixed 3-layer MLP is hand-derived below (mathematically identical).
    def sgd_step(carry):
        A1r, b1, A2, b2, A3r, b3 = carry
        z1, h1, z2, h2, y = fwd(xs, A1r, b1, A2, b2, A3r, b3)

        dy = inv_n * (y - ys)                                  # (K, 1)

        # Layer 3 (degenerate dim-1): sublane reduce / outer product on VPU+XLU.
        dA3r = jnp.sum(h2 * dy, axis=0, keepdims=True)         # (1, 128)
        db3 = jnp.sum(dy, axis=0, keepdims=True)               # (1, 1)
        dh2 = dy * A3r                                         # (K, 128)
        dz2 = jnp.where(z2 > 0.0, dh2, 0.0)

        # Layer 2: dense 128x128 pieces stay on the MXU.
        dA2 = lax.dot_general(h1, dz2, (((0,), (0,)), ((), ())),
                              preferred_element_type=jnp.float32)   # (128, 128)
        db2 = jnp.sum(dz2, axis=0, keepdims=True)                   # (1, 128)
        dh1 = lax.dot_general(dz2, A2, (((1,), (1,)), ((), ())),
                              preferred_element_type=jnp.float32)   # (K, 128)
        dz1 = jnp.where(z1 > 0.0, dh1, 0.0)

        # Layer 1 (degenerate dim-1): weighted sublane sums, no MXU.
        dA1r = jnp.sum(xs * dz1, axis=0, keepdims=True)        # (1, 128)
        db1 = jnp.sum(dz1, axis=0, keepdims=True)              # (1, 128)

        # SGD parameter update: param - gd_lr * grad. Gradients are zero at all
        # padded positions, so the zero-padding invariant is preserved.
        return (A1r - gd_lr * dA1r, b1 - gd_lr * db1,
                A2 - gd_lr * dA2, b2 - gd_lr * db2,
                A3r - gd_lr * dA3r, b3 - gd_lr * db3)

    carry = (A1r, b1, A2, b2, A3r, b3)
    if inner_iters <= 8:
        # Small, fixed trip count: full unroll keeps the LLO scheduler happy.
        for _ in range(inner_iters):
            carry = sgd_step(carry)
    else:
        # Bound live ranges (avoid vreg spills) when the inner loop is long.
        carry = lax.fori_loop(0, inner_iters, lambda _, c: sgd_step(c), carry)

    A1r, b1, A2, b2, A3r, b3 = carry
    # Query forward pass with adapted params, scaled by 1/temperature.
    _, _, _, _, yq = fwd(xq, A1r, b1, A2, b2, A3r, b3)
    out_ref[0] = yq * inv_t


def maml_forward(data_shot, data_query, label_shot, params,
                 inner_iters=5, gd_lr=0.01, temperature=1.0):
    """Mirrors MAML.forward(data_shot, data_query, label_shot, mode='test').

    Accepts either a single task (2-D inputs, [K, 1]) or a batch of tasks
    (3-D inputs, [T, K, 1]); all tasks adapt from the same initial params.
    """
    squeeze_task = False
    if data_shot.ndim == 2:
        data_shot = data_shot[None]
        label_shot = label_shot[None]
        data_query = data_query[None]
        squeeze_task = True

    T, K, _ = data_shot.shape
    Q = data_query.shape[1]
    slab = pack_params(params)

    kernel = functools.partial(maml_kernel,
                               inner_iters=inner_iters,
                               gd_lr=gd_lr,
                               temperature=temperature)

    grid_spec = pltpu.PrefetchScalarGridSpec(
        num_scalar_prefetch=0,
        grid=(T,),
        in_specs=[
            pl.BlockSpec((1, K, IN_DIM), lambda t: (t, 0, 0)),     # support x
            pl.BlockSpec((1, K, OUT_DIM), lambda t: (t, 0, 0)),    # support y
            pl.BlockSpec((1, Q, IN_DIM), lambda t: (t, 0, 0)),     # query x
            pl.BlockSpec((P_ROWS, HID_P), lambda t: (0, 0)),       # packed params
        ],
        out_specs=pl.BlockSpec((1, Q, OUT_DIM), lambda t: (t, 0, 0)),
    )

    out = pl.pallas_call(
        kernel,
        out_shape=jax.ShapeDtypeStruct((T, Q, OUT_DIM), jnp.float32),
        grid_spec=grid_spec,
        compiler_params=pltpu.CompilerParams(
            dimension_semantics=("parallel",)),   # v7x: shard tasks over 2 TCs
    )(data_shot, label_shot, data_query, slab)

    if squeeze_task:
        out = out[0]
    return [out]  # list of logits, single-stage ('test') path


def _reference_forward(data_shot, data_query, label_shot, params,
                       inner_iters, gd_lr, temperature):
    """Pure-JAX single-task reference with identical math (unpadded)."""
    A1, b1, A2, b2, A3, b3 = params
    n_elems = float(data_shot.shape[0] * OUT_DIM)
    for _ in range(inner_iters):
        z1 = data_shot @ A1 + b1; h1 = jnp.maximum(z1, 0.0)
        z2 = h1 @ A2 + b2;        h2 = jnp.maximum(z2, 0.0)
        y = h2 @ A3 + b3
        dy = (2.0 / n_elems) * (y - label_shot)
        dA3 = h2.T @ dy; db3 = dy.sum(0, keepdims=True)
        dz2 = jnp.where(z2 > 0.0, dy @ A3.T, 0.0)
        dA2 = h1.T @ dz2; db2 = dz2.sum(0, keepdims=True)
        dz1 = jnp.where(z1 > 0.0, dz2 @ A2.T, 0.0)
        dA1 = data_shot.T @ dz1; db1 = dz1.sum(0, keepdims=True)
        A1 = A1 - gd_lr * dA1; b1 = b1 - gd_lr * db1
        A2 = A2 - gd_lr * dA2; b2 = b2 - gd_lr * db2
        A3 = A3 - gd_lr * dA3; b3 = b3 - gd_lr * db3
    z1 = data_query @ A1 + b1; h1 = jnp.maximum(z1, 0.0)
    z2 = h1 @ A2 + b2;         h2 = jnp.maximum(z2, 0.0)
    return (h2 @ A3 + b3) / temperature


def init_params(key):
    """Deterministic MLP params (Kaiming-uniform-style like torch Linear)."""
    ks = jax.random.split(key, 6)

    def linear(kw, kb, fan_in, fan_out):
        bound = 1.0 / np.sqrt(fan_in)
        W_t = jax.random.uniform(kw, (fan_in, fan_out), jnp.float32,
                                 -bound, bound)          # stored transposed
        b = jax.random.uniform(kb, (1, fan_out), jnp.float32, -bound, bound)
        return W_t, b

    A1, b1 = linear(ks[0], ks[1], IN_DIM, HID)
    A2, b2 = linear(ks[2], ks[3], HID, HID)
    A3, b3 = linear(ks[4], ks[5], HID, OUT_DIM)
    return (A1, b1, A2, b2, A3, b3)


if __name__ == "__main__":
    key = jax.random.PRNGKey(0)
    k_params, k_shot, k_query = jax.random.split(key, 3)

    # Sinusoid-regression style tasks: T tasks, K support / Q query points, 1-D io.
    T, K, Q = 8, 10, 10
    data_shot = jax.random.uniform(k_shot, (T, K, IN_DIM), jnp.float32, -5.0, 5.0)
    label_shot = jnp.sin(data_shot)
    data_query = jax.random.uniform(k_query, (T, Q, IN_DIM), jnp.float32, -5.0, 5.0)

    params = init_params(k_params)

    inner_iters, gd_lr, temperature = 5, 0.01, 1.0

    logits = maml_forward(data_shot, data_query, label_shot, params,
                          inner_iters=inner_iters, gd_lr=gd_lr,
                          temperature=temperature)
    out = jax.block_until_ready(logits[0])               # (T, Q, 1)

    ref = jnp.stack([
        _reference_forward(data_shot[t], data_query[t], label_shot[t], params,
                           inner_iters, gd_lr, temperature)
        for t in range(T)
    ])
    np.testing.assert_allclose(np.asarray(out), np.asarray(ref),
                               rtol=1e-4, atol=1e-5)

    print("KERNEL_OK")
</pallas_src>

<mosaic_0001>
module attributes {stable_mosaic.version = 11 : i64} {
  func.func @maml_kernel(%arg0: i32, %arg1: memref<1x10x1xf32, #tpu.memory_space<vmem>>, %arg2: memref<1x10x1xf32, #tpu.memory_space<vmem>>, %arg3: memref<1x10x1xf32, #tpu.memory_space<vmem>>, %arg4: memref<136x128xf32, #tpu.memory_space<vmem>>, %arg5: memref<1x10x1xf32, #tpu.memory_space<vmem>>) attributes {dimension_semantics = [#tpu.dimension_semantics<parallel>], iteration_bounds = array<i64: 8>, scalar_prefetch = 0 : i64, scratch_operands = 0 : i64, tpu.core_type = #tpu.core_type<tc>, window_params = [{transform_indices = @transform_0, window_bounds = array<i64: 1, 10, 1>}, {transform_indices = @transform_1, window_bounds = array<i64: 1, 10, 1>}, {transform_indices = @transform_2, window_bounds = array<i64: 1, 10, 1>}, {pipeline_mode = #tpu.pipeline_mode<synchronous>, transform_indices = @transform_3, window_bounds = array<i64: 136, 128>}, {transform_indices = @transform_4, window_bounds = array<i64: 1, 10, 1>}]} {
    %c0 = arith.constant 0 : index
    %c0_0 = arith.constant 0 : index
    %c0_1 = arith.constant 0 : index
    %0 = vector.load %arg1[%c0, %c0_0, %c0_1] : memref<1x10x1xf32, #tpu.memory_space<vmem>>, vector<1x10x1xf32>
    %1 = vector.shape_cast %0 : vector<1x10x1xf32> to vector<10x1xf32>
    %c0_2 = arith.constant 0 : index
    %c0_3 = arith.constant 0 : index
    %c0_4 = arith.constant 0 : index
    %2 = vector.load %arg2[%c0_2, %c0_3, %c0_4] : memref<1x10x1xf32, #tpu.memory_space<vmem>>, vector<1x10x1xf32>
    %3 = vector.shape_cast %2 : vector<1x10x1xf32> to vector<10x1xf32>
    %c0_5 = arith.constant 0 : index
    %c0_6 = arith.constant 0 : index
    %c0_7 = arith.constant 0 : index
    %4 = vector.load %arg3[%c0_5, %c0_6, %c0_7] : memref<1x10x1xf32, #tpu.memory_space<vmem>>, vector<1x10x1xf32>
    %5 = vector.shape_cast %4 : vector<1x10x1xf32> to vector<10x1xf32>
    %c0_8 = arith.constant 0 : index
    %c0_9 = arith.constant 0 : index
    %6 = vector.load %arg4[%c0_8, %c0_9] : memref<136x128xf32, #tpu.memory_space<vmem>>, vector<128x128xf32>
    %c128 = arith.constant 128 : index
    %c0_10 = arith.constant 0 : index
    %7 = vector.load %arg4[%c128, %c0_10] : memref<136x128xf32, #tpu.memory_space<vmem>>, vector<8x128xf32>
    %8 = vector.extract_strided_slice %7 {offsets = [0, 0], sizes = [1, 128], strides = [1, 1]} : vector<8x128xf32> to vector<1x128xf32>
    %9 = vector.extract_strided_slice %7 {offsets = [1, 0], sizes = [1, 128], strides = [1, 1]} : vector<8x128xf32> to vector<1x128xf32>
    %10 = vector.extract_strided_slice %7 {offsets = [2, 0], sizes = [1, 128], strides = [1, 1]} : vector<8x128xf32> to vector<1x128xf32>
    %11 = vector.extract_strided_slice %7 {offsets = [3, 0], sizes = [1, 128], strides = [1, 1]} : vector<8x128xf32> to vector<1x128xf32>
    %12 = vector.extract_strided_slice %7 {offsets = [4, 0], sizes = [1, 1], strides = [1, 1]} : vector<8x128xf32> to vector<1x1xf32>
    %13 = vector.broadcast %1 : vector<10x1xf32> to vector<10x128xf32>
    %14 = vector.broadcast %8 : vector<1x128xf32> to vector<10x128xf32>
    %15 = arith.mulf %13, %14 : vector<10x128xf32>
    %16 = vector.broadcast %9 : vector<1x128xf32> to vector<10x128xf32>
    %17 = arith.addf %15, %16 : vector<10x128xf32>
    %cst = arith.constant 0.000000e+00 : f32
    %18 = vector.broadcast %cst : f32 to vector<10x128xf32>
    %19 = arith.maximumf %17, %18 : vector<10x128xf32>
    %cst_11 = arith.constant dense<0.000000e+00> : vector<10x128xf32>
    %20 = tpu.matmul %19, %6, %cst_11 {dimension_numbers = #tpu.dot_dimension_numbers<[1], [0], [0], [1], [0, 0, 1, 1], [], []>} : vector<10x128xf32>, vector<128x128xf32>, vector<10x128xf32> -> vector<10x128xf32>
    %21 = vector.broadcast %10 : vector<1x128xf32> to vector<10x128xf32>
    %22 = arith.addf %20, %21 : vector<10x128xf32>
    %cst_12 = arith.constant 0.000000e+00 : f32
    %23 = vector.broadcast %cst_12 : f32 to vector<10x128xf32>
    %24 = arith.maximumf %22, %23 : vector<10x128xf32>
    %25 = vector.broadcast %11 : vector<1x128xf32> to vector<10x128xf32>
    %26 = arith.mulf %24, %25 : vector<10x128xf32>
    %cst_13 = arith.constant dense<0.000000e+00> : vector<10xf32>
    %27 = vector.multi_reduction <add>, %26, %cst_13 [1] : vector<10x128xf32> to vector<10xf32>
    %28 = vector.shape_cast %27 : vector<10xf32> to vector<10x1xf32>
    %29 = vector.broadcast %12 : vector<1x1xf32> to vector<10x1xf32>
    %30 = arith.addf %28, %29 : vector<10x1xf32>
    %31 = arith.subf %30, %3 : vector<10x1xf32>
    %cst_14 = arith.constant 2.000000e-01 : f32
    %32 = vector.broadcast %cst_14 : f32 to vector<10x1xf32>
    %33 = arith.mulf %32, %31 : vector<10x1xf32>
    %34 = vector.broadcast %33 : vector<10x1xf32> to vector<10x128xf32>
    %35 = arith.mulf %24, %34 : vector<10x128xf32>
    %cst_15 = arith.constant dense<0.000000e+00> : vector<128xf32>
    %36 = vector.multi_reduction <add>, %35, %cst_15 [0] : vector<10x128xf32> to vector<128xf32>
    %37 = vector.shape_cast %36 : vector<128xf32> to vector<1x128xf32>
    %cst_16 = arith.constant dense<0.000000e+00> : vector<1xf32>
    %38 = vector.multi_reduction <add>, %33, %cst_16 [0] : vector<10x1xf32> to vector<1xf32>
    %39 = vector.shape_cast %38 : vector<1xf32> to vector<1x1xf32>
    %40 = vector.broadcast %33 : vector<10x1xf32> to vector<10x128xf32>
    %41 = vector.broadcast %11 : vector<1x128xf32> to vector<10x128xf32>
    %42 = arith.mulf %40, %41 : vector<10x128xf32>
    %cst_17 = arith.constant 0.000000e+00 : f32
    %43 = vector.broadcast %cst_17 : f32 to vector<10x128xf32>
    %44 = arith.cmpf ogt, %22, %43 : vector<10x128xf32>
    %cst_18 = arith.constant 0.000000e+00 : f32
    %45 = vector.broadcast %cst_18 : f32 to vector<10x128xf32>
    %46 = arith.select %44, %42, %45 : vector<10x128xi1>, vector<10x128xf32>
    %cst_19 = arith.constant dense<0.000000e+00> : vector<128x128xf32>
    %47 = tpu.matmul %19, %46, %cst_19 {dimension_numbers = #tpu.dot_dimension_numbers<[0], [0], [1], [1], [0, 1, 1, 1], [], []>} : vector<10x128xf32>, vector<10x128xf32>, vector<128x128xf32> -> vector<128x128xf32>
    %cst_20 = arith.constant dense<0.000000e+00> : vector<128xf32>
    %48 = vector.multi_reduction <add>, %46, %cst_20 [0] : vector<10x128xf32> to vector<128xf32>
    %49 = vector.shape_cast %48 : vector<128xf32> to vector<1x128xf32>
    %cst_21 = arith.constant dense<0.000000e+00> : vector<10x128xf32>
    %50 = tpu.matmul %46, %6, %cst_21 {dimension_numbers = #tpu.dot_dimension_numbers<[1], [1], [0], [0], [0, 0, 1, 0], [], []>} : vector<10x128xf32>, vector<128x128xf32>, vector<10x128xf32> -> vector<10x128xf32>
    %cst_22 = arith.constant 0.000000e+00 : f32
    %51 = vector.broadcast %cst_22 : f32 to vector<10x128xf32>
    %52 = arith.cmpf ogt, %17, %51 : vector<10x128xf32>
    %cst_23 = arith.constant 0.000000e+00 : f32
    %53 = vector.broadcast %cst_23 : f32 to vector<10x128xf32>
    %54 = arith.select %52, %50, %53 : vector<10x128xi1>, vector<10x128xf32>
    %55 = vector.broadcast %1 : vector<10x1xf32> to vector<10x128xf32>
    %56 = arith.mulf %55, %54 : vector<10x128xf32>
    %cst_24 = arith.constant dense<0.000000e+00> : vector<128xf32>
    %57 = vector.multi_reduction <add>, %56, %cst_24 [0] : vector<10x128xf32> to vector<128xf32>
    %58 = vector.shape_cast %57 : vector<128xf32> to vector<1x128xf32>
    %cst_25 = arith.constant dense<0.000000e+00> : vector<128xf32>
    %59 = vector.multi_reduction <add>, %54, %cst_25 [0] : vector<10x128xf32> to vector<128xf32>
    %60 = vector.shape_cast %59 : vector<128xf32> to vector<1x128xf32>
    %cst_26 = arith.constant 0.00999999977 : f32
    %61 = vector.broadcast %cst_26 : f32 to vector<1x128xf32>
    %62 = arith.mulf %61, %58 : vector<1x128xf32>
    %63 = arith.subf %8, %62 : vector<1x128xf32>
    %cst_27 = arith.constant 0.00999999977 : f32
    %64 = vector.broadcast %cst_27 : f32 to vector<1x128xf32>
    %65 = arith.mulf %64, %60 : vector<1x128xf32>
    %66 = arith.subf %9, %65 : vector<1x128xf32>
    %cst_28 = arith.constant 0.00999999977 : f32
    %67 = vector.broadcast %cst_28 : f32 to vector<128x128xf32>
    %68 = arith.mulf %67, %47 : vector<128x128xf32>
    %69 = arith.subf %6, %68 : vector<128x128xf32>
    %cst_29 = arith.constant 0.00999999977 : f32
    %70 = vector.broadcast %cst_29 : f32 to vector<1x128xf32>
    %71 = arith.mulf %70, %49 : vector<1x128xf32>
    %72 = arith.subf %10, %71 : vector<1x128xf32>
    %cst_30 = arith.constant 0.00999999977 : f32
    %73 = vector.broadcast %cst_30 : f32 to vector<1x128xf32>
    %74 = arith.mulf %73, %37 : vector<1x128xf32>
    %75 = arith.subf %11, %74 : vector<1x128xf32>
    %cst_31 = arith.constant 0.00999999977 : f32
    %76 = vector.broadcast %cst_31 : f32 to vector<1x1xf32>
    %77 = arith.mulf %76, %39 : vector<1x1xf32>
    %78 = arith.subf %12, %77 : vector<1x1xf32>
    %79 = vector.broadcast %1 : vector<10x1xf32> to vector<10x128xf32>
    %80 = vector.broadcast %63 : vector<1x128xf32> to vector<10x128xf32>
    %81 = arith.mulf %79, %80 : vector<10x128xf32>
    %82 = vector.broadcast %66 : vector<1x128xf32> to vector<10x128xf32>
    %83 = arith.addf %81, %82 : vector<10x128xf32>
    %cst_32 = arith.constant 0.000000e+00 : f32
    %84 = vector.broadcast %cst_32 : f32 to vector<10x128xf32>
    %85 = arith.maximumf %83, %84 : vector<10x128xf32>
    %cst_33 = arith.constant dense<0.000000e+00> : vector<10x128xf32>
    %86 = tpu.matmul %85, %69, %cst_33 {dimension_numbers = #tpu.dot_dimension_numbers<[1], [0], [0], [1], [0, 0, 1, 1], [], []>} : vector<10x128xf32>, vector<128x128xf32>, vector<10x128xf32> -> vector<10x128xf32>
    %87 = vector.broadcast %72 : vector<1x128xf32> to vector<10x128xf32>
    %88 = arith.addf %86, %87 : vector<10x128xf32>
    %cst_34 = arith.constant 0.000000e+00 : f32
    %89 = vector.broadcast %cst_34 : f32 to vector<10x128xf32>
    %90 = arith.maximumf %88, %89 : vector<10x128xf32>
    %91 = vector.broadcast %75 : vector<1x128xf32> to vector<10x128xf32>
    %92 = arith.mulf %90, %91 : vector<10x128xf32>
    %cst_35 = arith.constant dense<0.000000e+00> : vector<10xf32>
    %93 = vector.multi_reduction <add>, %92, %cst_35 [1] : vector<10x128xf32> to vector<10xf32>
    %94 = vector.shape_cast %93 : vector<10xf32> to vector<10x1xf32>
    %95 = vector.broadcast %78 : vector<1x1xf32> to vector<10x1xf32>
    %96 = arith.addf %94, %95 : vector<10x1xf32>
    %97 = arith.subf %96, %3 : vector<10x1xf32>
    %cst_36 = arith.constant 2.000000e-01 : f32
    %98 = vector.broadcast %cst_36 : f32 to vector<10x1xf32>
    %99 = arith.mulf %98, %97 : vector<10x1xf32>
    %100 = vector.broadcast %99 : vector<10x1xf32> to vector<10x128xf32>
    %101 = arith.mulf %90, %100 : vector<10x128xf32>
    %cst_37 = arith.constant dense<0.000000e+00> : vector<128xf32>
    %102 = vector.multi_reduction <add>, %101, %cst_37 [0] : vector<10x128xf32> to vector<128xf32>
    %103 = vector.shape_cast %102 : vector<128xf32> to vector<1x128xf32>
    %cst_38 = arith.constant dense<0.000000e+00> : vector<1xf32>
    %104 = vector.multi_reduction <add>, %99, %cst_38 [0] : vector<10x1xf32> to vector<1xf32>
    %105 = vector.shape_cast %104 : vector<1xf32> to vector<1x1xf32>
    %106 = vector.broadcast %99 : vector<10x1xf32> to vector<10x128xf32>
    %107 = vector.broadcast %75 : vector<1x128xf32> to vector<10x128xf32>
    %108 = arith.mulf %106, %107 : vector<10x128xf32>
    %cst_39 = arith.constant 0.000000e+00 : f32
    %109 = vector.broadcast %cst_39 : f32 to vector<10x128xf32>
    %110 = arith.cmpf ogt, %88, %109 : vector<10x128xf32>
    %cst_40 = arith.constant 0.000000e+00 : f32
    %111 = vector.broadcast %cst_40 : f32 to vector<10x128xf32>
    %112 = arith.select %110, %108, %111 : vector<10x128xi1>, vector<10x128xf32>
    %cst_41 = arith.constant dense<0.000000e+00> : vector<128x128xf32>
    %113 = tpu.matmul %85, %112, %cst_41 {dimension_numbers = #tpu.dot_dimension_numbers<[0], [0], [1], [1], [0, 1, 1, 1], [], []>} : vector<10x128xf32>, vector<10x128xf32>, vector<128x128xf32> -> vector<128x128xf32>
    %cst_42 = arith.constant dense<0.000000e+00> : vector<128xf32>
    %114 = vector.multi_reduction <add>, %112, %cst_42 [0] : vector<10x128xf32> to vector<128xf32>
    %115 = vector.shape_cast %114 : vector<128xf32> to vector<1x128xf32>
    %cst_43 = arith.constant dense<0.000000e+00> : vector<10x128xf32>
    %116 = tpu.matmul %112, %69, %cst_43 {dimension_numbers = #tpu.dot_dimension_numbers<[1], [1], [0], [0], [0, 0, 1, 0], [], []>} : vector<10x128xf32>, vector<128x128xf32>, vector<10x128xf32> -> vector<10x128xf32>
    %cst_44 = arith.constant 0.000000e+00 : f32
    %117 = vector.broadcast %cst_44 : f32 to vector<10x128xf32>
    %118 = arith.cmpf ogt, %83, %117 : vector<10x128xf32>
    %cst_45 = arith.constant 0.000000e+00 : f32
    %119 = vector.broadcast %cst_45 : f32 to vector<10x128xf32>
    %120 = arith.select %118, %116, %119 : vector<10x128xi1>, vector<10x128xf32>
    %121 = vector.broadcast %1 : vector<10x1xf32> to vector<10x128xf32>
    %122 = arith.mulf %121, %120 : vector<10x128xf32>
    %cst_46 = arith.constant dense<0.000000e+00> : vector<128xf32>
    %123 = vector.multi_reduction <add>, %122, %cst_46 [0] : vector<10x128xf32> to vector<128xf32>
    %124 = vector.shape_cast %123 : vector<128xf32> to vector<1x128xf32>
    %cst_47 = arith.constant dense<0.000000e+00> : vector<128xf32>
    %125 = vector.multi_reduction <add>, %120, %cst_47 [0] : vector<10x128xf32> to vector<128xf32>
    %126 = vector.shape_cast %125 : vector<128xf32> to vector<1x128xf32>
    %cst_48 = arith.constant 0.00999999977 : f32
    %127 = vector.broadcast %cst_48 : f32 to vector<1x128xf32>
    %128 = arith.mulf %127, %124 : vector<1x128xf32>
    %129 = arith.subf %63, %128 : vector<1x128xf32>
    %cst_49 = arith.constant 0.00999999977 : f32
    %130 = vector.broadcast %cst_49 : f32 to vector<1x128xf32>
    %131 = arith.mulf %130, %126 : vector<1x128xf32>
    %132 = arith.subf %66, %131 : vector<1x128xf32>
    %cst_50 = arith.constant 0.00999999977 : f32
    %133 = vector.broadcast %cst_50 : f32 to vector<128x128xf32>
    %134 = arith.mulf %133, %113 : vector<128x128xf32>
    %135 = arith.subf %69, %134 : vector<128x128xf32>
    %cst_51 = arith.constant 0.00999999977 : f32
    %136 = vector.broadcast %cst_51 : f32 to vector<1x128xf32>
    %137 = arith.mulf %136, %115 : vector<1x128xf32>
    %138 = arith.subf %72, %137 : vector<1x128xf32>
    %cst_52 = arith.constant 0.00999999977 : f32
    %139 = vector.broadcast %cst_52 : f32 to vector<1x128xf32>
    %140 = arith.mulf %139, %103 : vector<1x128xf32>
    %141 = arith.subf %75, %140 : vector<1x128xf32>
    %cst_53 = arith.constant 0.00999999977 : f32
    %142 = vector.broadcast %cst_53 : f32 to vector<1x1xf32>
    %143 = arith.mulf %142, %105 : vector<1x1xf32>
    %144 = arith.subf %78, %143 : vector<1x1xf32>
    %145 = vector.broadcast %1 : vector<10x1xf32> to vector<10x128xf32>
    %146 = vector.broadcast %129 : vector<1x128xf32> to vector<10x128xf32>
    %147 = arith.mulf %145, %146 : vector<10x128xf32>
    %148 = vector.broadcast %132 : vector<1x128xf32> to vector<10x128xf32>
    %149 = arith.addf %147, %148 : vector<10x128xf32>
    %cst_54 = arith.constant 0.000000e+00 : f32
    %150 = vector.broadcast %cst_54 : f32 to vector<10x128xf32>
    %151 = arith.maximumf %149, %150 : vector<10x128xf32>
    %cst_55 = arith.constant dense<0.000000e+00> : vector<10x128xf32>
    %152 = tpu.matmul %151, %135, %cst_55 {dimension_numbers = #tpu.dot_dimension_numbers<[1], [0], [0], [1], [0, 0, 1, 1], [], []>} : vector<10x128xf32>, vector<128x128xf32>, vector<10x128xf32> -> vector<10x128xf32>
    %153 = vector.broadcast %138 : vector<1x128xf32> to vector<10x128xf32>
    %154 = arith.addf %152, %153 : vector<10x128xf32>
    %cst_56 = arith.constant 0.000000e+00 : f32
    %155 = vector.broadcast %cst_56 : f32 to vector<10x128xf32>
    %156 = arith.maximumf %154, %155 : vector<10x128xf32>
    %157 = vector.broadcast %141 : vector<1x128xf32> to vector<10x128xf32>
    %158 = arith.mulf %156, %157 : vector<10x128xf32>
    %cst_57 = arith.constant dense<0.000000e+00> : vector<10xf32>
    %159 = vector.multi_reduction <add>, %158, %cst_57 [1] : vector<10x128xf32> to vector<10xf32>
    %160 = vector.shape_cast %159 : vector<10xf32> to vector<10x1xf32>
    %161 = vector.broadcast %144 : vector<1x1xf32> to vector<10x1xf32>
    %162 = arith.addf %160, %161 : vector<10x1xf32>
    %163 = arith.subf %162, %3 : vector<10x1xf32>
    %cst_58 = arith.constant 2.000000e-01 : f32
    %164 = vector.broadcast %cst_58 : f32 to vector<10x1xf32>
    %165 = arith.mulf %164, %163 : vector<10x1xf32>
    %166 = vector.broadcast %165 : vector<10x1xf32> to vector<10x128xf32>
    %167 = arith.mulf %156, %166 : vector<10x128xf32>
    %cst_59 = arith.constant dense<0.000000e+00> : vector<128xf32>
    %168 = vector.multi_reduction <add>, %167, %cst_59 [0] : vector<10x128xf32> to vector<128xf32>
    %169 = vector.shape_cast %168 : vector<128xf32> to vector<1x128xf32>
    %cst_60 = arith.constant dense<0.000000e+00> : vector<1xf32>
    %170 = vector.multi_reduction <add>, %165, %cst_60 [0] : vector<10x1xf32> to vector<1xf32>
    %171 = vector.shape_cast %170 : vector<1xf32> to vector<1x1xf32>
    %172 = vector.broadcast %165 : vector<10x1xf32> to vector<10x128xf32>
    %173 = vector.broadcast %141 : vector<1x128xf32> to vector<10x128xf32>
    %174 = arith.mulf %172, %173 : vector<10x128xf32>
    %cst_61 = arith.constant 0.000000e+00 : f32
    %175 = vector.broadcast %cst_61 : f32 to vector<10x128xf32>
    %176 = arith.cmpf ogt, %154, %175 : vector<10x128xf32>
    %cst_62 = arith.constant 0.000000e+00 : f32
    %177 = vector.broadcast %cst_62 : f32 to vector<10x128xf32>
    %178 = arith.select %176, %174, %177 : vector<10x128xi1>, vector<10x128xf32>
    %cst_63 = arith.constant dense<0.000000e+00> : vector<128x128xf32>
    %179 = tpu.matmul %151, %178, %cst_63 {dimension_numbers = #tpu.dot_dimension_numbers<[0], [0], [1], [1], [0, 1, 1, 1], [], []>} : vector<10x128xf32>, vector<10x128xf32>, vector<128x128xf32> -> vector<128x128xf32>
    %cst_64 = arith.constant dense<0.000000e+00> : vector<128xf32>
    %180 = vector.multi_reduction <add>, %178, %cst_64 [0] : vector<10x128xf32> to vector<128xf32>
    %181 = vector.shape_cast %180 : vector<128xf32> to vector<1x128xf32>
    %cst_65 = arith.constant dense<0.000000e+00> : vector<10x128xf32>
    %182 = tpu.matmul %178, %135, %cst_65 {dimension_numbers = #tpu.dot_dimension_numbers<[1], [1], [0], [0], [0, 0, 1, 0], [], []>} : vector<10x128xf32>, vector<128x128xf32>, vector<10x128xf32> -> vector<10x128xf32>
    %cst_66 = arith.constant 0.000000e+00 : f32
    %183 = vector.broadcast %cst_66 : f32 to vector<10x128xf32>
    %184 = arith.cmpf ogt, %149, %183 : vector<10x128xf32>
    %cst_67 = arith.constant 0.000000e+00 : f32
    %185 = vector.broadcast %cst_67 : f32 to vector<10x128xf32>
    %186 = arith.select %184, %182, %185 : vector<10x128xi1>, vector<10x128xf32>
    %187 = vector.broadcast %1 : vector<10x1xf32> to vector<10x128xf32>
    %188 = arith.mulf %187, %186 : vector<10x128xf32>
    %cst_68 = arith.constant dense<0.000000e+00> : vector<128xf32>
    %189 = vector.multi_reduction <add>, %188, %cst_68 [0] : vector<10x128xf32> to vector<128xf32>
    %190 = vector.shape_cast %189 : vector<128xf32> to vector<1x128xf32>
    %cst_69 = arith.constant dense<0.000000e+00> : vector<128xf32>
    %191 = vector.multi_reduction <add>, %186, %cst_69 [0] : vector<10x128xf32> to vector<128xf32>
    %192 = vector.shape_cast %191 : vector<128xf32> to vector<1x128xf32>
    %cst_70 = arith.constant 0.00999999977 : f32
    %193 = vector.broadcast %cst_70 : f32 to vector<1x128xf32>
    %194 = arith.mulf %193, %190 : vector<1x128xf32>
    %195 = arith.subf %129, %194 : vector<1x128xf32>
    %cst_71 = arith.constant 0.00999999977 : f32
    %196 = vector.broadcast %cst_71 : f32 to vector<1x128xf32>
    %197 = arith.mulf %196, %192 : vector<1x128xf32>
    %198 = arith.subf %132, %197 : vector<1x128xf32>
    %cst_72 = arith.constant 0.00999999977 : f32
    %199 = vector.broadcast %cst_72 : f32 to vector<128x128xf32>
    %200 = arith.mulf %199, %179 : vector<128x128xf32>
    %201 = arith.subf %135, %200 : vector<128x128xf32>
    %cst_73 = arith.constant 0.00999999977 : f32
    %202 = vector.broadcast %cst_73 : f32 to vector<1x128xf32>
    %203 = arith.mulf %202, %181 : vector<1x128xf32>
    %204 = arith.subf %138, %203 : vector<1x128xf32>
    %cst_74 = arith.constant 0.00999999977 : f32
    %205 = vector.broadcast %cst_74 : f32 to vector<1x128xf32>
    %206 = arith.mulf %205, %169 : vector<1x128xf32>
    %207 = arith.subf %141, %206 : vector<1x128xf32>
    %cst_75 = arith.constant 0.00999999977 : f32
    %208 = vector.broadcast %cst_75 : f32 to vector<1x1xf32>
    %209 = arith.mulf %208, %171 : vector<1x1xf32>
    %210 = arith.subf %144, %209 : vector<1x1xf32>
    %211 = vector.broadcast %1 : vector<10x1xf32> to vector<10x128xf32>
    %212 = vector.broadcast %195 : vector<1x128xf32> to vector<10x128xf32>
    %213 = arith.mulf %211, %212 : vector<10x128xf32>
    %214 = vector.broadcast %198 : vector<1x128xf32> to vector<10x128xf32>
    %215 = arith.addf %213, %214 : vector<10x128xf32>
    %cst_76 = arith.constant 0.000000e+00 : f32
    %216 = vector.broadcast %cst_76 : f32 to vector<10x128xf32>
    %217 = arith.maximumf %215, %216 : vector<10x128xf32>
    %cst_77 = arith.constant dense<0.000000e+00> : vector<10x128xf32>
    %218 = tpu.matmul %217, %201, %cst_77 {dimension_numbers = #tpu.dot_dimension_numbers<[1], [0], [0], [1], [0, 0, 1, 1], [], []>} : vector<10x128xf32>, vector<128x128xf32>, vector<10x128xf32> -> vector<10x128xf32>
    %219 = vector.broadcast %204 : vector<1x128xf32> to vector<10x128xf32>
    %220 = arith.addf %218, %219 : vector<10x128xf32>
    %cst_78 = arith.constant 0.000000e+00 : f32
    %221 = vector.broadcast %cst_78 : f32 to vector<10x128xf32>
    %222 = arith.maximumf %220, %221 : vector<10x128xf32>
    %223 = vector.broadcast %207 : vector<1x128xf32> to vector<10x128xf32>
    %224 = arith.mulf %222, %223 : vector<10x128xf32>
    %cst_79 = arith.constant dense<0.000000e+00> : vector<10xf32>
    %225 = vector.multi_reduction <add>, %224, %cst_79 [1] : vector<10x128xf32> to vector<10xf32>
    %226 = vector.shape_cast %225 : vector<10xf32> to vector<10x1xf32>
    %227 = vector.broadcast %210 : vector<1x1xf32> to vector<10x1xf32>
    %228 = arith.addf %226, %227 : vector<10x1xf32>
    %229 = arith.subf %228, %3 : vector<10x1xf32>
    %cst_80 = arith.constant 2.000000e-01 : f32
    %230 = vector.broadcast %cst_80 : f32 to vector<10x1xf32>
    %231 = arith.mulf %230, %229 : vector<10x1xf32>
    %232 = vector.broadcast %231 : vector<10x1xf32> to vector<10x128xf32>
    %233 = arith.mulf %222, %232 : vector<10x128xf32>
    %cst_81 = arith.constant dense<0.000000e+00> : vector<128xf32>
    %234 = vector.multi_reduction <add>, %233, %cst_81 [0] : vector<10x128xf32> to vector<128xf32>
    %235 = vector.shape_cast %234 : vector<128xf32> to vector<1x128xf32>
    %cst_82 = arith.constant dense<0.000000e+00> : vector<1xf32>
    %236 = vector.multi_reduction <add>, %231, %cst_82 [0] : vector<10x1xf32> to vector<1xf32>
    %237 = vector.shape_cast %236 : vector<1xf32> to vector<1x1xf32>
    %238 = vector.broadcast %231 : vector<10x1xf32> to vector<10x128xf32>
    %239 = vector.broadcast %207 : vector<1x128xf32> to vector<10x128xf32>
    %240 = arith.mulf %238, %239 : vector<10x128xf32>
    %cst_83 = arith.constant 0.000000e+00 : f32
    %241 = vector.broadcast %cst_83 : f32 to vector<10x128xf32>
    %242 = arith.cmpf ogt, %220, %241 : vector<10x128xf32>
    %cst_84 = arith.constant 0.000000e+00 : f32
    %243 = vector.broadcast %cst_84 : f32 to vector<10x128xf32>
    %244 = arith.select %242, %240, %243 : vector<10x128xi1>, vector<10x128xf32>
    %cst_85 = arith.constant dense<0.000000e+00> : vector<128x128xf32>
    %245 = tpu.matmul %217, %244, %cst_85 {dimension_numbers = #tpu.dot_dimension_numbers<[0], [0], [1], [1], [0, 1, 1, 1], [], []>} : vector<10x128xf32>, vector<10x128xf32>, vector<128x128xf32> -> vector<128x128xf32>
    %cst_86 = arith.constant dense<0.000000e+00> : vector<128xf32>
    %246 = vector.multi_reduction <add>, %244, %cst_86 [0] : vector<10x128xf32> to vector<128xf32>
    %247 = vector.shape_cast %246 : vector<128xf32> to vector<1x128xf32>
    %cst_87 = arith.constant dense<0.000000e+00> : vector<10x128xf32>
    %248 = tpu.matmul %244, %201, %cst_87 {dimension_numbers = #tpu.dot_dimension_numbers<[1], [1], [0], [0], [0, 0, 1, 0], [], []>} : vector<10x128xf32>, vector<128x128xf32>, vector<10x128xf32> -> vector<10x128xf32>
    %cst_88 = arith.constant 0.000000e+00 : f32
    %249 = vector.broadcast %cst_88 : f32 to vector<10x128xf32>
    %250 = arith.cmpf ogt, %215, %249 : vector<10x128xf32>
    %cst_89 = arith.constant 0.000000e+00 : f32
    %251 = vector.broadcast %cst_89 : f32 to vector<10x128xf32>
    %252 = arith.select %250, %248, %251 : vector<10x128xi1>, vector<10x128xf32>
    %253 = vector.broadcast %1 : vector<10x1xf32> to vector<10x128xf32>
    %254 = arith.mulf %253, %252 : vector<10x128xf32>
    %cst_90 = arith.constant dense<0.000000e+00> : vector<128xf32>
    %255 = vector.multi_reduction <add>, %254, %cst_90 [0] : vector<10x128xf32> to vector<128xf32>
    %256 = vector.shape_cast %255 : vector<128xf32> to vector<1x128xf32>
    %cst_91 = arith.constant dense<0.000000e+00> : vector<128xf32>
    %257 = vector.multi_reduction <add>, %252, %cst_91 [0] : vector<10x128xf32> to vector<128xf32>
    %258 = vector.shape_cast %257 : vector<128xf32> to vector<1x128xf32>
    %cst_92 = arith.constant 0.00999999977 : f32
    %259 = vector.broadcast %cst_92 : f32 to vector<1x128xf32>
    %260 = arith.mulf %259, %256 : vector<1x128xf32>
    %261 = arith.subf %195, %260 : vector<1x128xf32>
    %cst_93 = arith.constant 0.00999999977 : f32
    %262 = vector.broadcast %cst_93 : f32 to vector<1x128xf32>
    %263 = arith.mulf %262, %258 : vector<1x128xf32>
    %264 = arith.subf %198, %263 : vector<1x128xf32>
    %cst_94 = arith.constant 0.00999999977 : f32
    %265 = vector.broadcast %cst_94 : f32 to vector<128x128xf32>
    %266 = arith.mulf %265, %245 : vector<128x128xf32>
    %267 = arith.subf %201, %266 : vector<128x128xf32>
    %cst_95 = arith.constant 0.00999999977 : f32
    %268 = vector.broadcast %cst_95 : f32 to vector<1x128xf32>
    %269 = arith.mulf %268, %247 : vector<1x128xf32>
    %270 = arith.subf %204, %269 : vector<1x128xf32>
    %cst_96 = arith.constant 0.00999999977 : f32
    %271 = vector.broadcast %cst_96 : f32 to vector<1x128xf32>
    %272 = arith.mulf %271, %235 : vector<1x128xf32>
    %273 = arith.subf %207, %272 : vector<1x128xf32>
    %cst_97 = arith.constant 0.00999999977 : f32
    %274 = vector.broadcast %cst_97 : f32 to vector<1x1xf32>
    %275 = arith.mulf %274, %237 : vector<1x1xf32>
    %276 = arith.subf %210, %275 : vector<1x1xf32>
    %277 = vector.broadcast %1 : vector<10x1xf32> to vector<10x128xf32>
    %278 = vector.broadcast %261 : vector<1x128xf32> to vector<10x128xf32>
    %279 = arith.mulf %277, %278 : vector<10x128xf32>
    %280 = vector.broadcast %264 : vector<1x128xf32> to vector<10x128xf32>
    %281 = arith.addf %279, %280 : vector<10x128xf32>
    %cst_98 = arith.constant 0.000000e+00 : f32
    %282 = vector.broadcast %cst_98 : f32 to vector<10x128xf32>
    %283 = arith.maximumf %281, %282 : vector<10x128xf32>
    %cst_99 = arith.constant dense<0.000000e+00> : vector<10x128xf32>
    %284 = tpu.matmul %283, %267, %cst_99 {dimension_numbers = #tpu.dot_dimension_numbers<[1], [0], [0], [1], [0, 0, 1, 1], [], []>} : vector<10x128xf32>, vector<128x128xf32>, vector<10x128xf32> -> vector<10x128xf32>
    %285 = vector.broadcast %270 : vector<1x128xf32> to vector<10x128xf32>
    %286 = arith.addf %284, %285 : vector<10x128xf32>
    %cst_100 = arith.constant 0.000000e+00 : f32
    %287 = vector.broadcast %cst_100 : f32 to vector<10x128xf32>
    %288 = arith.maximumf %286, %287 : vector<10x128xf32>
    %289 = vector.broadcast %273 : vector<1x128xf32> to vector<10x128xf32>
    %290 = arith.mulf %288, %289 : vector<10x128xf32>
    %cst_101 = arith.constant dense<0.000000e+00> : vector<10xf32>
    %291 = vector.multi_reduction <add>, %290, %cst_101 [1] : vector<10x128xf32> to vector<10xf32>
    %292 = vector.shape_cast %291 : vector<10xf32> to vector<10x1xf32>
    %293 = vector.broadcast %276 : vector<1x1xf32> to vector<10x1xf32>
    %294 = arith.addf %292, %293 : vector<10x1xf32>
    %295 = arith.subf %294, %3 : vector<10x1xf32>
    %cst_102 = arith.constant 2.000000e-01 : f32
    %296 = vector.broadcast %cst_102 : f32 to vector<10x1xf32>
    %297 = arith.mulf %296, %295 : vector<10x1xf32>
    %298 = vector.broadcast %297 : vector<10x1xf32> to vector<10x128xf32>
    %299 = arith.mulf %288, %298 : vector<10x128xf32>
    %cst_103 = arith.constant dense<0.000000e+00> : vector<128xf32>
    %300 = vector.multi_reduction <add>, %299, %cst_103 [0] : vector<10x128xf32> to vector<128xf32>
    %301 = vector.shape_cast %300 : vector<128xf32> to vector<1x128xf32>
    %cst_104 = arith.constant dense<0.000000e+00> : vector<1xf32>
    %302 = vector.multi_reduction <add>, %297, %cst_104 [0] : vector<10x1xf32> to vector<1xf32>
    %303 = vector.shape_cast %302 : vector<1xf32> to vector<1x1xf32>
    %304 = vector.broadcast %297 : vector<10x1xf32> to vector<10x128xf32>
    %305 = vector.broadcast %273 : vector<1x128xf32> to vector<10x128xf32>
    %306 = arith.mulf %304, %305 : vector<10x128xf32>
    %cst_105 = arith.constant 0.000000e+00 : f32
    %307 = vector.broadcast %cst_105 : f32 to vector<10x128xf32>
    %308 = arith.cmpf ogt, %286, %307 : vector<10x128xf32>
    %cst_106 = arith.constant 0.000000e+00 : f32
    %309 = vector.broadcast %cst_106 : f32 to vector<10x128xf32>
    %310 = arith.select %308, %306, %309 : vector<10x128xi1>, vector<10x128xf32>
    %cst_107 = arith.constant dense<0.000000e+00> : vector<128x128xf32>
    %311 = tpu.matmul %283, %310, %cst_107 {dimension_numbers = #tpu.dot_dimension_numbers<[0], [0], [1], [1], [0, 1, 1, 1], [], []>} : vector<10x128xf32>, vector<10x128xf32>, vector<128x128xf32> -> vector<128x128xf32>
    %cst_108 = arith.constant dense<0.000000e+00> : vector<128xf32>
    %312 = vector.multi_reduction <add>, %310, %cst_108 [0] : vector<10x128xf32> to vector<128xf32>
    %313 = vector.shape_cast %312 : vector<128xf32> to vector<1x128xf32>
    %cst_109 = arith.constant dense<0.000000e+00> : vector<10x128xf32>
    %314 = tpu.matmul %310, %267, %cst_109 {dimension_numbers = #tpu.dot_dimension_numbers<[1], [1], [0], [0], [0, 0, 1, 0], [], []>} : vector<10x128xf32>, vector<128x128xf32>, vector<10x128xf32> -> vector<10x128xf32>
    %cst_110 = arith.constant 0.000000e+00 : f32
    %315 = vector.broadcast %cst_110 : f32 to vector<10x128xf32>
    %316 = arith.cmpf ogt, %281, %315 : vector<10x128xf32>
    %cst_111 = arith.constant 0.000000e+00 : f32
    %317 = vector.broadcast %cst_111 : f32 to vector<10x128xf32>
    %318 = arith.select %316, %314, %317 : vector<10x128xi1>, vector<10x128xf32>
    %319 = vector.broadcast %1 : vector<10x1xf32> to vector<10x128xf32>
    %320 = arith.mulf %319, %318 : vector<10x128xf32>
    %cst_112 = arith.constant dense<0.000000e+00> : vector<128xf32>
    %321 = vector.multi_reduction <add>, %320, %cst_112 [0] : vector<10x128xf32> to vector<128xf32>
    %322 = vector.shape_cast %321 : vector<128xf32> to vector<1x128xf32>
    %cst_113 = arith.constant dense<0.000000e+00> : vector<128xf32>
    %323 = vector.multi_reduction <add>, %318, %cst_113 [0] : vector<10x128xf32> to vector<128xf32>
    %324 = vector.shape_cast %323 : vector<128xf32> to vector<1x128xf32>
    %cst_114 = arith.constant 0.00999999977 : f32
    %325 = vector.broadcast %cst_114 : f32 to vector<1x128xf32>
    %326 = arith.mulf %325, %322 : vector<1x128xf32>
    %327 = arith.subf %261, %326 : vector<1x128xf32>
    %cst_115 = arith.constant 0.00999999977 : f32
    %328 = vector.broadcast %cst_115 : f32 to vector<1x128xf32>
    %329 = arith.mulf %328, %324 : vector<1x128xf32>
    %330 = arith.subf %264, %329 : vector<1x128xf32>
    %cst_116 = arith.constant 0.00999999977 : f32
    %331 = vector.broadcast %cst_116 : f32 to vector<128x128xf32>
    %332 = arith.mulf %331, %311 : vector<128x128xf32>
    %333 = arith.subf %267, %332 : vector<128x128xf32>
    %cst_117 = arith.constant 0.00999999977 : f32
    %334 = vector.broadcast %cst_117 : f32 to vector<1x128xf32>
    %335 = arith.mulf %334, %313 : vector<1x128xf32>
    %336 = arith.subf %270, %335 : vector<1x128xf32>
    %cst_118 = arith.constant 0.00999999977 : f32
    %337 = vector.broadcast %cst_118 : f32 to vector<1x128xf32>
    %338 = arith.mulf %337, %301 : vector<1x128xf32>
    %339 = arith.subf %273, %338 : vector<1x128xf32>
    %cst_119 = arith.constant 0.00999999977 : f32
    %340 = vector.broadcast %cst_119 : f32 to vector<1x1xf32>
    %341 = arith.mulf %340, %303 : vector<1x1xf32>
    %342 = arith.subf %276, %341 : vector<1x1xf32>
    %343 = vector.broadcast %5 : vector<10x1xf32> to vector<10x128xf32>
    %344 = vector.broadcast %327 : vector<1x128xf32> to vector<10x128xf32>
    %345 = arith.mulf %343, %344 : vector<10x128xf32>
    %346 = vector.broadcast %330 : vector<1x128xf32> to vector<10x128xf32>
    %347 = arith.addf %345, %346 : vector<10x128xf32>
    %cst_120 = arith.constant 0.000000e+00 : f32
    %348 = vector.broadcast %cst_120 : f32 to vector<10x128xf32>
    %349 = arith.maximumf %347, %348 : vector<10x128xf32>
    %cst_121 = arith.constant dense<0.000000e+00> : vector<10x128xf32>
    %350 = tpu.matmul %349, %333, %cst_121 {dimension_numbers = #tpu.dot_dimension_numbers<[1], [0], [0], [1], [0, 0, 1, 1], [], []>} : vector<10x128xf32>, vector<128x128xf32>, vector<10x128xf32> -> vector<10x128xf32>
    %351 = vector.broadcast %336 : vector<1x128xf32> to vector<10x128xf32>
    %352 = arith.addf %350, %351 : vector<10x128xf32>
    %cst_122 = arith.constant 0.000000e+00 : f32
    %353 = vector.broadcast %cst_122 : f32 to vector<10x128xf32>
    %354 = arith.maximumf %352, %353 : vector<10x128xf32>
    %355 = vector.broadcast %339 : vector<1x128xf32> to vector<10x128xf32>
    %356 = arith.mulf %354, %355 : vector<10x128xf32>
    %cst_123 = arith.constant dense<0.000000e+00> : vector<10xf32>
    %357 = vector.multi_reduction <add>, %356, %cst_123 [1] : vector<10x128xf32> to vector<10xf32>
    %358 = vector.shape_cast %357 : vector<10xf32> to vector<10x1xf32>
    %359 = vector.broadcast %342 : vector<1x1xf32> to vector<10x1xf32>
    %360 = arith.addf %358, %359 : vector<10x1xf32>
    %cst_124 = arith.constant 1.000000e+00 : f32
    %361 = vector.broadcast %cst_124 : f32 to vector<10x1xf32>
    %362 = arith.mulf %360, %361 : vector<10x1xf32>
    %c0_125 = arith.constant 0 : index
    %c0_126 = arith.constant 0 : index
    %c0_127 = arith.constant 0 : index
    %363 = vector.load %arg5[%c0_125, %c0_126, %c0_127] : memref<1x10x1xf32, #tpu.memory_space<vmem>>, vector<1x10x1xf32>
    %364 = vector.shape_cast %363 : vector<1x10x1xf32> to vector<10x1xf32>
    %365 = vector.shape_cast %362 : vector<10x1xf32> to vector<1x10x1xf32>
    tpu.vector_store %arg5[%c0_125, %c0_126, %c0_127], %365 {strides = array<i32>} : memref<1x10x1xf32, #tpu.memory_space<vmem>>, vector<1x10x1xf32>,
    return
  }
  func.func @transform_0(%arg0: i32) -> (i32, i32, i32) {
    %c0_i32 = arith.constant 0 : i32
    %c0_i32_0 = arith.constant 0 : i32
    %c0_i32_1 = arith.constant 0 : i32
    return %arg0, %c0_i32, %c0_i32_0 : i32, i32, i32
  }
  func.func @transform_1(%arg0: i32) -> (i32, i32, i32) {
    %c0_i32 = arith.constant 0 : i32
    %c0_i32_0 = arith.constant 0 : i32
    %c0_i32_1 = arith.constant 0 : i32
    return %arg0, %c0_i32, %c0_i32_0 : i32, i32, i32
  }
  func.func @transform_2(%arg0: i32) -> (i32, i32, i32) {
    %c0_i32 = arith.constant 0 : i32
    %c0_i32_0 = arith.constant 0 : i32
    %c0_i32_1 = arith.constant 0 : i32
    return %arg0, %c0_i32, %c0_i32_0 : i32, i32, i32
  }
  func.func @transform_3(%arg0: i32) -> (i32, i32) {
    %c0_i32 = arith.constant 0 : i32
    %c0_i32_0 = arith.constant 0 : i32
    %c0_i32_1 = arith.constant 0 : i32
    return %c0_i32, %c0_i32_0 : i32, i32
  }
  func.func @transform_4(%arg0: i32) -> (i32, i32, i32) {
    %c0_i32 = arith.constant 0 : i32
    %c0_i32_0 = arith.constant 0 : i32
    %c0_i32_1 = arith.constant 0 : i32
    return %arg0, %c0_i32, %c0_i32_0 : i32, i32, i32
  }
}

</mosaic_0001>

<llo_original>
// kernel: tpu_custom_call.1
$region0: #{tpu_custom_call.1}
  #allocation0 [shape = 'u32[]', space=smem, size = 0x4, offset = 0x4, fixed_abs, tag = 'smem constant byte address 0x4 - core index']
  #allocation1 [shape = 'u32[72,128]{1,0:T(1,128)}', space=vmem, size = 0x9000, scoped, tag = 'internal scratch']
  %s0 = inlined_call_operand.vmem [shape: f32[8,10,1], index: 0, kind: input, shape index: {}]
  %s1 = inlined_call_operand.vmem [shape: f32[8,10,1], index: 1, kind: input, shape index: {}]
  %s2 = inlined_call_operand.vmem [shape: f32[8,10,1], index: 2, kind: input, shape index: {}]
  %s3 = inlined_call_operand.vmem [shape: f32[136,128], index: 3, kind: input, shape index: {}]
  %s4 = inlined_call_operand.vmem [shape: f32[8,10,1], index: 4, kind: output, shape index: {}]
  %s5 = sld [smem:[#allocation0]]
  $region49: #{tpu_custom_call.1} parent=0
    _
  %s7 = ssub.s32 1, %s5
  %s8 = scalar_select 0, %s7, %s5
  loop: start=0, step=1, limit=10
  $region2: #{tpu_custom_call.1} parent=0 // loop_pre_header
    _
  $region3: #{tpu_custom_call.1} parent=0 // loop_header
    %s10 = sphi 0, %s14
    %p11 = scmp.ge.s32.totalorder %s10, 10
    %s20 = sphi 0, %s22
    %s23 = sphi 0, %s20
    %s24 = sphi 0, %s23
    %s40 = sphi 0, %s24
    %s46 = sphi 0, %s48
    %s49 = sphi 0, %s46
    %s50 = sphi 0, %s49
    %s66 = sphi 0, %s50
    %s72 = sphi 0, %s74
    %s75 = sphi 0, %s72
    %s76 = sphi 0, %s75
    %s92 = sphi 0, %s76
    %s96 = sphi 0, %s96
    %s98 = sphi 0, %s96
    %s99 = sphi 0, %s98
    %s113 = sphi 0, %s99
    %s119 = sphi 0, %s121
    %s122 = sphi 0, %s119
    %s123 = sphi 0, %s122
    %s139 = sphi 0, %s123
  $region4: #{tpu_custom_call.1} parent=0 // loop_header_branch
    %13 = sbr.rel (%p11) target = $region8
  $region5: #{tpu_custom_call.1} parent=0 // loop_body
    %s15 = ssub.s32 %s10, 1
    %s16 = ssub.s32 %s10, 2
    %s17 = sadd.s32 %s10, 1
    %s18 = ssub.s32 %s10, %s17
    %p19 = scmp.eq.s32.totalorder %s18, 0
    %s21 = sadd.s32 %s20, 1
    %s22 = scalar_select %p19, %s20, %s21
    %p25 = pneg %p19
    %p26 = scmp.eq.s32.totalorder %s10, 7
    %p27 = por %p25, %p26
    %p28 = scmp.ne.s32.totalorder %s20, %s23
    %p29 = scmp.eq.s32.totalorder %s10, 0
    %p30 = por %p28, %p29
    %p31 = scmp.ne.s32.totalorder %s20, %s23
    %p32 = scmp.eq.s32.totalorder %s15, 7
    %p33 = por %p31, %p32
    %p34 = scmp.ne.s32.totalorder %s23, %s24
    %p35 = scmp.eq.s32.totalorder %s15, 0
    %p36 = por %p34, %p35
    %p37 = scmp.ne.s32.totalorder %s23, %s24
    %p38 = scmp.eq.s32.totalorder %s16, 7
    %p39 = por %p37, %p38
    %p41 = scmp.ne.s32.totalorder %s24, %s40
    %p42 = scmp.eq.s32.totalorder %s16, 0
    %p43 = por %p41, %p42
    %s44 = ssub.s32 %s10, %s17
    %p45 = scmp.eq.s32.totalorder %s44, 0
    %s47 = sadd.s32 %s46, 1
    %s48 = scalar_select %p45, %s46, %s47
    %p51 = pneg %p45
    %p52 = scmp.eq.s32.totalorder %s10, 7
    %p53 = por %p51, %p52
    %p54 = scmp.ne.s32.totalorder %s46, %s49
    %p55 = scmp.eq.s32.totalorder %s10, 0
    %p56 = por %p54, %p55
    %p57 = scmp.ne.s32.totalorder %s46, %s49
    %p58 = scmp.eq.s32.totalorder %s15, 7
    %p59 = por %p57, %p58
    %p60 = scmp.ne.s32.totalorder %s49, %s50
    %p61 = scmp.eq.s32.totalorder %s15, 0
    %p62 = por %p60, %p61
    %p63 = scmp.ne.s32.totalorder %s49, %s50
    %p64 = scmp.eq.s32.totalorder %s16, 7
    %p65 = por %p63, %p64
    %p67 = scmp.ne.s32.totalorder %s50, %s66
    %p68 = scmp.eq.s32.totalorder %s16, 0
    %p69 = por %p67, %p68
    %s70 = ssub.s32 %s10, %s17
    %p71 = scmp.eq.s32.totalorder %s70, 0
    %s73 = sadd.s32 %s72, 1
    %s74 = scalar_select %p71, %s72, %s73
    %p77 = pneg %p71
    %p78 = scmp.eq.s32.totalorder %s10, 7
    %p79 = por %p77, %p78
    %p80 = scmp.ne.s32.totalorder %s72, %s75
    %p81 = scmp.eq.s32.totalorder %s10, 0
    %p82 = por %p80, %p81
    %p83 = scmp.ne.s32.totalorder %s72, %s75
    %p84 = scmp.eq.s32.totalorder %s15, 7
    %p85 = por %p83, %p84
    %p86 = scmp.ne.s32.totalorder %s75, %s76
    %p87 = scmp.eq.s32.totalorder %s15, 0
    %p88 = por %p86, %p87
    %p89 = scmp.ne.s32.totalorder %s75, %s76
    %p90 = scmp.eq.s32.totalorder %s16, 7
    %p91 = por %p89, %p90
    %p93 = scmp.ne.s32.totalorder %s76, %s92
    %p94 = scmp.eq.s32.totalorder %s16, 0
    %p95 = por %p93, %p94
    %s97 = sadd.s32 %s96, 1
    %p100 = scmp.eq.s32.totalorder %s10, 7
    %p101 = scmp.ne.s32.totalorder %s96, %s98
    %p102 = scmp.eq.s32.totalorder %s10, 0
    %p103 = por %p101, %p102
    %p104 = scmp.ne.s32.totalorder %s96, %s98
    %p105 = scmp.eq.s32.totalorder %s15, 7
    %p106 = por %p104, %p105
    %p107 = scmp.ne.s32.totalorder %s98, %s99
    %p108 = scmp.eq.s32.totalorder %s15, 0
    %p109 = por %p107, %p108
    %p110 = scmp.ne.s32.totalorder %s98, %s99
    %p111 = scmp.eq.s32.totalorder %s16, 7
    %p112 = por %p110, %p111
    %p114 = scmp.ne.s32.totalorder %s99, %s113
    %p115 = scmp.eq.s32.totalorder %s16, 0
    %p116 = por %p114, %p115
    %s117 = ssub.s32 %s10, %s17
    %p118 = scmp.eq.s32.totalorder %s117, 0
    %s120 = sadd.s32 %s119, 1
    %s121 = scalar_select %p118, %s119, %s120
    %p124 = pneg %p118
    %p125 = scmp.eq.s32.totalorder %s10, 7
    %p126 = por %p124, %p125
    %p127 = scmp.ne.s32.totalorder %s119, %s122
    %p128 = scmp.eq.s32.totalorder %s10, 0
    %p129 = por %p127, %p128
    %p130 = scmp.ne.s32.totalorder %s119, %s122
    %p131 = scmp.eq.s32.totalorder %s15, 7
    %p132 = por %p130, %p131
    %p133 = scmp.ne.s32.totalorder %s122, %s123
    %p134 = scmp.eq.s32.totalorder %s15, 0
    %p135 = por %p133, %p134
    %p136 = scmp.ne.s32.totalorder %s122, %s123
    %p137 = scmp.eq.s32.totalorder %s16, 7
    %p138 = por %p136, %p137
    %p140 = scmp.ne.s32.totalorder %s123, %s139
    %p141 = scmp.eq.s32.totalorder %s16, 0
    %p142 = por %p140, %p141
    %p143 = scmp.le.s32.totalorder 1, %s10
    %p144 = scmp.lt.s32.totalorder %s10, 9
    %p145 = pnand %p143, %p144
    %p146 = pneg %p145
    // Predicated region
    $region9: #{tpu_custom_call.1} parent=5 // pred_check
      _
    $region10: #{tpu_custom_call.1} parent=5 // pred_check_branch
      %148 = sbr.rel (%p145) target = $region12
    $region11: #{tpu_custom_call.1} parent=5 // pred_region
      %s149 = ssub.s32 %s10, 1
      // Predicated region
      $region13: #{tpu_custom_call.1} parent=11 // pred_check
        %p150 = pneg %p109
      $region14: #{tpu_custom_call.1} parent=11 // pred_check_branch
        %152 = sbr.rel (%p150) target = $region16
      $region15: #{tpu_custom_call.1} parent=11 // pred_region
        _
      $region16: #{tpu_custom_call.1} parent=11 // pred_fallthru
        _
    $region12: #{tpu_custom_call.1} parent=5 // pred_fallthru
      _
    %p153 = scmp.lt.s32.totalorder %s10, 8
    // Predicated region
    $region17: #{tpu_custom_call.1} parent=5 // pred_check
      %p154 = pneg %p153
    $region18: #{tpu_custom_call.1} parent=5 // pred_check_branch
      %156 = sbr.rel (%p154) target = $region20
    $region19: #{tpu_custom_call.1} parent=5 // pred_region
      // Predicated region
      $region21: #{tpu_custom_call.1} parent=19 // pred_check
        %p157 = pneg %p30
      $region22: #{tpu_custom_call.1} parent=19 // pred_check_branch
        %159 = sbr.rel (%p157) target = $region24
      $region23: #{tpu_custom_call.1} parent=19 // pred_region
        %p160 = scmp.lt.s32.totalorder %s10, 7
        %s161 = scalar_select %p160, %s10, 7
        %s162 = smul.addr %s161, 2
        %s163 = smul.addr %s162, 8
        %s164 = scalar_lea.vmem %s0, %s163
      $region24: #{tpu_custom_call.1} parent=19 // pred_fallthru
        _
      // Predicated region
      $region25: #{tpu_custom_call.1} parent=19 // pred_check
        %p165 = pneg %p56
      $region26: #{tpu_custom_call.1} parent=19 // pred_check_branch
        %167 = sbr.rel (%p165) target = $region28
      $region27: #{tpu_custom_call.1} parent=19 // pred_region
        %p168 = scmp.lt.s32.totalorder %s10, 7
        %s169 = scalar_select %p168, %s10, 7
        %s170 = smul.addr %s169, 2
        %s171 = smul.addr %s170, 8
        %s172 = scalar_lea.vmem %s1, %s171
      $region28: #{tpu_custom_call.1} parent=19 // pred_fallthru
        _
      // Predicated region
      $region29: #{tpu_custom_call.1} parent=19 // pred_check
        %p173 = pneg %p82
      $region30: #{tpu_custom_call.1} parent=19 // pred_check_branch
        %175 = sbr.rel (%p173) target = $region32
      $region31: #{tpu_custom_call.1} parent=19 // pred_region
        %p176 = scmp.lt.s32.totalorder %s10, 7
        %s177 = scalar_select %p176, %s10, 7
        %s178 = smul.addr %s177, 2
        %s179 = smul.addr %s178, 8
        %s180 = scalar_lea.vmem %s2, %s179
      $region32: #{tpu_custom_call.1} parent=19 // pred_fallthru
        _
    $region20: #{tpu_custom_call.1} parent=5 // pred_fallthru
      _
    %p181 = scmp.le.s32.totalorder 1, %s10
    %p182 = scmp.lt.s32.totalorder %s10, 9
    %p183 = pnand %p181, %p182
    %p184 = pneg %p183
    // Predicated region
    $region33: #{tpu_custom_call.1} parent=5 // pred_check
      _
    $region34: #{tpu_custom_call.1} parent=5 // pred_check_branch
      %186 = sbr.rel (%p183) target = $region36
    $region35: #{tpu_custom_call.1} parent=5 // pred_region
      %s187 = ssub.s32 %s10, 1
      %p188 = scmp.lt.s32.totalorder %s15, 7
      %s189 = scalar_select %p188, %s15, 7
      %s190 = smul.addr %s189, 2
      %s191 = smul.addr %s190, 8
      %s192 = scalar_lea.vmem %s0, %s191
      %p193 = pneg %p36
      %p194 = pneg %p33
      %p195 = scmp.lt.s32.totalorder %s15, 7
      %s196 = scalar_select %p195, %s15, 7
      %s197 = smul.addr %s196, 2
      %s198 = smul.addr %s197, 8
      %s199 = scalar_lea.vmem %s1, %s198
      %p200 = pneg %p62
      %p201 = pneg %p59
      %p202 = scmp.lt.s32.totalorder %s15, 7
      %s203 = scalar_select %p202, %s15, 7
      %s204 = smul.addr %s203, 2
      %s205 = smul.addr %s204, 8
      %s206 = scalar_lea.vmem %s2, %s205
      %p207 = pneg %p88
      %p208 = pneg %p85
      %p209 = pneg %p109
      %p210 = pneg %p106
      %p211 = pneg %p135
      %p212 = pneg %p132
      %p213 = scmp.lt.s32.totalorder %s15, 7
      %s214 = scalar_select %p213, %s15, 7
      %s215 = smul.addr %s214, 2
      %s216 = smul.addr %s215, 8
      %s217 = scalar_lea.vmem %s4, %s216
      %p218 = scmp.lt.s32.totalorder %s15, 7
      %s219 = scalar_select %p218, %s15, 7
      %s220 = smul.addr %s219, 2
      %s221 = smul.addr %s220, 8
      %s222 = scalar_lea.vmem %s0, %s221
      %p223 = scmp.lt.s32.totalorder %s15, 7
      %s224 = scalar_select %p223, %s15, 7
      %s225 = smul.addr %s224, 2
      %s226 = smul.addr %s225, 8
      %s227 = scalar_lea.vmem %s1, %s226
      %p228 = scmp.lt.s32.totalorder %s15, 7
      %s229 = scalar_select %p228, %s15, 7
      %s230 = smul.addr %s229, 2
      %s231 = smul.addr %s230, 8
      %s232 = scalar_lea.vmem %s2, %s231
      %p233 = scmp.lt.s32.totalorder %s15, 7
      %s234 = scalar_select %p233, %s15, 7
      %s235 = smul.addr %s234, 2
      %s236 = smul.addr %s235, 8
      %s237 = scalar_lea.vmem %s4, %s236
      %v238 = vld [vmem:[%s222] sm:$0xff]
      %v239 = vld [vmem:[%s222 + $0x8] sm:$0x3]
      %v240 = vld [vmem:[%s227] sm:$0xff]
      %v241 = vld [vmem:[%s227 + $0x8] sm:$0x3]
      %v242 = vld [vmem:[%s232] sm:$0xff]
      %v243 = vld [vmem:[%s232 + $0x8] sm:$0x3]
      %v244 = vld [vmem:[%s3] sm:$0xff]
      %v245 = vld [vmem:[%s3 + $0x8] sm:$0xff]
      %v246 = vld [vmem:[%s3 + $0x10] sm:$0xff]
      %v247 = vld [vmem:[%s3 + $0x18] sm:$0xff]
      %v248 = vld [vmem:[%s3 + $0x20] sm:$0xff]
      %v249 = vld [vmem:[%s3 + $0x28] sm:$0xff]
      %v250 = vld [vmem:[%s3 + $0x30] sm:$0xff]
      %v251 = vld [vmem:[%s3 + $0x38] sm:$0xff]
      %v252 = vld [vmem:[%s3 + $0x40] sm:$0xff]
      %v253 = vld [vmem:[%s3 + $0x48] sm:$0xff]
      %v254 = vld [vmem:[%s3 + $0x50] sm:$0xff]
      %v255 = vld [vmem:[%s3 + $0x58] sm:$0xff]
      %v256 = vld [vmem:[%s3 + $0x60] sm:$0xff]
      %v257 = vld [vmem:[%s3 + $0x68] sm:$0xff]
      %v258 = vld [vmem:[%s3 + $0x70] sm:$0xff]
      %v259 = vld [vmem:[%s3 + $0x78] sm:$0xff]
      %v260 = vld [vmem:[%s3 + $0x80] sm:$0xff]
      %262 = vset.pattern.permute.xlu0 0
      %263 = vperm.xlu0 %262, %v238
      %v264 = vpop.permute.xlu0 %263
      %267 = vset.pattern.permute.xlu0 0
      %268 = vperm.xlu0 %267, %v239
      %v269 = vpop.permute.xlu0 %268
      %v271 = vperm.slane %v260, 0
      %v272 = vmul.f32 %v264, %v271
      %v273 = vmul.f32 %v269, %v271
      %v274 = vperm.slane %v260, 1
      %v275 = vadd.f32 %v272, %v274
      %v276 = vadd.f32 %v273, %v274
      %v277 = vmax.f32 %v275, 0.0
      %v278 = vmax.f32 %v276, 0.0
      %v279 = vperm.slane %v260, 2
      %280 = vmatpush.msra.mxu0 %v259
      %281 = vmatpush.msra.mxu0 %v258
      %282 = vmatpush.msra.mxu0 %v257
      %283 = vmatpush.msra.mxu0 %v256
      %284 = vmatpush.msra.mxu0 %v255
      %285 = vmatpush.msra.mxu0 %v254
      %286 = vmatpush.msra.mxu0 %v253
      %287 = vmatpush.msra.mxu0 %v252
      %288 = vmatpush.msra.mxu0 %v251
      %289 = vmatpush.msra.mxu0 %v250
      %290 = vmatpush.msra.mxu0 %v249
      %291 = vmatpush.msra.mxu0 %v248
      %292 = vmatpush.msra.mxu0 %v247
      %293 = vmatpush.msra.mxu0 %v246
      %294 = vmatpush.msra.mxu0 %v245
      %295 = vmatpush.msra.mxu0 %v244
      %296 = vmatmul.f32.gmra.mxu0 %v277
      %v297 = vpop.f32.mrf.mxu0
      %v298 = vadd.f32 %v279, %v297
      %299 = vmatmul.f32.gmra.mxu0 %v278
      %v300 = vpop.f32.mrf.mxu0
      %v301 = vadd.f32 %v279, %v300
      %302 = vdwg.mxu0
      %v303 = vmax.f32 %v298, 0.0
      %v304 = vmax.f32 %v301, 0.0
      %v305 = vperm.slane %v260, 3
      %v306 = vmul.f32 %v303, %v305
      %v307 = vmul.f32 %v304, %v305
      %308 = vadd.xlane.f32.xlu0 %v306
      %v309 = vpop.xlane.xlu0 %308
      %vm310 = vcmask 1041408
      %v311 = vsel %vm310, %v307, 0.0
      %312 = vadd.xlane.f32.xlu0 %v311
      %v313 = vpop.xlane.xlu0 %312
      %v314 = vperm.slane %v260, 4
      %v315 = vadd.f32 %v309, %v314
      %v316 = vadd.f32 %v313, %v314
      %v317 = vsub.f32 %v315, %v240
      %v318 = vsub.f32 %v316, %v241
      %v319 = vmul.f32 %v317, 0.2
      %v320 = vmul.f32 %v318, 0.2
      %322 = vset.pattern.permute.xlu0 0
      %323 = vperm.xlu0 %322, %v319
      %v324 = vpop.permute.xlu0 %323
      %327 = vset.pattern.permute.xlu0 0
      %328 = vperm.xlu0 %327, %v320
      %v329 = vpop.permute.xlu0 %328
      %v331 = vmul.f32 %v303, %v324
      %v332 = vmul.f32 %v304, %v329
      %v333 = vsel %vm310, %v332, 0.0
      %v334 = vadd.f32 %v331, %v333
      %v335 = vrot.slane %v334, 4
      %v336 = vadd.f32 %v334, %v335
      %v337 = vrot.slane %v336, 2
      %v338 = vadd.f32 %v336, %v337
      %v339 = vrot.slane %v338, 1
      %v340 = vadd.f32 %v338, %v339
      %vm341 = vcmask 7168
      %v342 = vsel %vm341, %v319, 0.0
      %vm343 = vcmask 1024
      %v344 = vsel %vm343, %v320, 0.0
      %v345 = vadd.f32 %v342, %v344
      %v346 = vrot.slane %v345, 4
      %v347 = vadd.f32 %v345, %v346
      %v348 = vrot.slane %v347, 2
      %v349 = vadd.f32 %v347, %v348
      %v350 = vrot.slane %v349, 1
      %v351 = vadd.f32 %v349, %v350
      %v352 = vmul.f32 %v324, %v305
      %v353 = vmul.f32 %v329, %v305
      %vm354 = vcmp.gt.f32.partialorder %v298, 0.0
      %vm355 = vcmp.gt.f32.partialorder %v301, 0.0
      %v356 = vsel %vm354, %v352, 0.0
      %v357 = vsel %vm355, %v353, 0.0
      %358 = vxpose.xlu0.b32.start [1/16] %v277, 128
      %359 = vxpose.xlu0.b32.cont [2/16] %v278, 128
      %360 = vxpose.xlu0.b32.cont [3/16] 0.0, 128
      %361 = vxpose.xlu0.b32.cont [4/16] 0.0, 128
      %362 = vxpose.xlu0.b32.cont [5/16] 0.0, 128
      %363 = vxpose.xlu0.b32.cont [6/16] 0.0, 128
      %364 = vxpose.xlu0.b32.cont [7/16] 0.0, 128
      %365 = vxpose.xlu0.b32.cont [8/16] 0.0, 128
      %366 = vxpose.xlu0.b32.cont [9/16] 0.0, 128
      %367 = vxpose.xlu0.b32.cont [10/16] 0.0, 128
      %368 = vxpose.xlu0.b32.cont [11/16] 0.0, 128
      %369 = vxpose.xlu0.b32.cont [12/16] 0.0, 128
      %370 = vxpose.xlu0.b32.cont [13/16] 0.0, 128
      %371 = vxpose.xlu0.b32.cont [14/16] 0.0, 128
      %372 = vxpose.xlu0.b32.cont [15/16] 0.0, 128
      %373 = vxpose.xlu0.b32.end [16/16] 0.0, 128
      %v374 = vpop.trf.xlu0
      %v375 = vpop.trf.xlu0
      %v376 = vpop.trf.xlu0
      %v377 = vpop.trf.xlu0
      %v378 = vpop.trf.xlu0
      %v379 = vpop.trf.xlu0
      %v380 = vpop.trf.xlu0
      %v381 = vpop.trf.xlu0
      %v382 = vpop.trf.xlu0
      %v383 = vpop.trf.xlu0
      %v384 = vpop.trf.xlu0
      %v385 = vpop.trf.xlu0
      %v386 = vpop.trf.xlu0
      %v387 = vpop.trf.xlu0
      %v388 = vpop.trf.xlu0
      %v389 = vpop.trf.xlu0
      %vm390 = vcmask 80896
      %v392 = vsel %vm390, %v374, 0
      %v395 = vsel %vm390, %v375, 0
      %v398 = vsel %vm390, %v376, 0
      %v401 = vsel %vm390, %v377, 0
      %v404 = vsel %vm390, %v378, 0
      %v407 = vsel %vm390, %v379, 0
      %v410 = vsel %vm390, %v380, 0
      %v413 = vsel %vm390, %v381, 0
      %v416 = vsel %vm390, %v382, 0
      %v419 = vsel %vm390, %v383, 0
      %v422 = vsel %vm390, %v384, 0
      %v425 = vsel %vm390, %v385, 0
      %v428 = vsel %vm390, %v386, 0
      %v431 = vsel %vm390, %v387, 0
      %v434 = vsel %vm390, %v388, 0
      %v437 = vsel %vm390, %v389, 0
      %v440 = vsel %vm310, %v357, 0
      %442 = vmatpush.msra.mxu0 0.0
      %443 = vmatpush.msra.mxu0 0.0
      %444 = vmatpush.msra.mxu0 0.0
      %445 = vmatpush.msra.mxu0 0.0
      %446 = vmatpush.msra.mxu0 0.0
      %447 = vmatpush.msra.mxu0 0.0
      %448 = vmatpush.msra.mxu0 0.0
      %449 = vmatpush.msra.mxu0 0.0
      %450 = vmatpush.msra.mxu0 0.0
      %451 = vmatpush.msra.mxu0 0.0
      %452 = vmatpush.msra.mxu0 0.0
      %453 = vmatpush.msra.mxu0 0.0
      %454 = vmatpush.msra.mxu0 0.0
      %455 = vmatpush.msra.mxu0 0.0
      %456 = vmatpush.msra.mxu0 %v440
      %457 = vmatpush.msra.mxu0 %v356
      %458 = vmatmul.f32.gmra.mxu0 %v392
      %v459 = vpop.f32.mrf.mxu0
      %v460 = vadd.f32 0.0, %v459
      %461 = vmatmul.f32.gmra.mxu0 %v395
      %v462 = vpop.f32.mrf.mxu0
      %v463 = vadd.f32 0.0, %v462
      %464 = vmatmul.f32.gmra.mxu0 %v398
      %v465 = vpop.f32.mrf.mxu0
      %v466 = vadd.f32 0.0, %v465
      %467 = vmatmul.f32.gmra.mxu0 %v401
      %v468 = vpop.f32.mrf.mxu0
      %v469 = vadd.f32 0.0, %v468
      %470 = vmatmul.f32.gmra.mxu0 %v404
      %v471 = vpop.f32.mrf.mxu0
      %v472 = vadd.f32 0.0, %v471
      %473 = vmatmul.f32.gmra.mxu0 %v407
      %v474 = vpop.f32.mrf.mxu0
      %v475 = vadd.f32 0.0, %v474
      %476 = vmatmul.f32.gmra.mxu0 %v410
      %v477 = vpop.f32.mrf.mxu0
      %v478 = vadd.f32 0.0, %v477
      %479 = vmatmul.f32.gmra.mxu0 %v413
      %v480 = vpop.f32.mrf.mxu0
      %v481 = vadd.f32 0.0, %v480
      %482 = vmatmul.f32.gmra.mxu0 %v416
      %v483 = vpop.f32.mrf.mxu0
      %v484 = vadd.f32 0.0, %v483
      %485 = vmatmul.f32.gmra.mxu0 %v419
      %v486 = vpop.f32.mrf.mxu0
      %v487 = vadd.f32 0.0, %v486
      %488 = vmatmul.f32.gmra.mxu0 %v422
      %v489 = vpop.f32.mrf.mxu0
      %v490 = vadd.f32 0.0, %v489
      %491 = vmatmul.f32.gmra.mxu0 %v425
      %v492 = vpop.f32.mrf.mxu0
      %v493 = vadd.f32 0.0, %v492
      %494 = vmatmul.f32.gmra.mxu0 %v428
      %v495 = vpop.f32.mrf.mxu0
      %v496 = vadd.f32 0.0, %v495
      %497 = vmatmul.f32.gmra.mxu0 %v431
      %v498 = vpop.f32.mrf.mxu0
      %v499 = vadd.f32 0.0, %v498
      %500 = vmatmul.f32.gmra.mxu0 %v434
      %v501 = vpop.f32.mrf.mxu0
      %v502 = vadd.f32 0.0, %v501
      %503 = vmatmul.f32.gmra.mxu0 %v437
      %v504 = vpop.f32.mrf.mxu0
      %v505 = vadd.f32 0.0, %v504
      %506 = vdwg.mxu0
      %v507 = vsel %vm310, %v357, 0.0
      %v508 = vadd.f32 %v356, %v507
      %v509 = vrot.slane %v508, 4
      %v510 = vadd.f32 %v508, %v509
      %v511 = vrot.slane %v510, 2
      %v512 = vadd.f32 %v510, %v511
      %v513 = vrot.slane %v512, 1
      %v514 = vadd.f32 %v512, %v513
      %515 = vmatpush.xpose.msra.mxu0 %v259
      %516 = vmatpush.xpose.msra.mxu0 %v258
      %517 = vmatpush.xpose.msra.mxu0 %v257
      %518 = vmatpush.xpose.msra.mxu0 %v256
      %519 = vmatpush.xpose.msra.mxu0 %v255
      %520 = vmatpush.xpose.msra.mxu0 %v254
      %521 = vmatpush.xpose.msra.mxu0 %v253
      %522 = vmatpush.xpose.msra.mxu0 %v252
      %523 = vmatpush.xpose.msra.mxu0 %v251
      %524 = vmatpush.xpose.msra.mxu0 %v250
      %525 = vmatpush.xpose.msra.mxu0 %v249
      %526 = vmatpush.xpose.msra.mxu0 %v248
      %527 = vmatpush.xpose.msra.mxu0 %v247
      %528 = vmatpush.xpose.msra.mxu0 %v246
      %529 = vmatpush.xpose.msra.mxu0 %v245
      %530 = vmatpush.xpose.msra.mxu0 %v244
      %531 = vmatmul.f32.gmra.mxu0 %v356
      %v532 = vpop.f32.mrf.mxu0
      %v533 = vadd.f32 0.0, %v532
      %534 = vmatmul.f32.gmra.mxu0 %v357
      %v535 = vpop.f32.mrf.mxu0
      %v536 = vadd.f32 0.0, %v535
      %537 = vdwg.mxu0
      %vm538 = vcmp.gt.f32.partialorder %v275, 0.0
      %vm539 = vcmp.gt.f32.partialorder %v276, 0.0
      %v540 = vsel %vm538, %v533, 0.0
      %v541 = vsel %vm539, %v536, 0.0
      %v542 = vmul.f32 %v264, %v540
      %v543 = vmul.f32 %v269, %v541
      %v544 = vsel %vm310, %v543, 0.0
      %v545 = vadd.f32 %v542, %v544
      %v546 = vrot.slane %v545, 4
      %v547 = vadd.f32 %v545, %v546
      %v548 = vrot.slane %v547, 2
      %v549 = vadd.f32 %v547, %v548
      %v550 = vrot.slane %v549, 1
      %v551 = vadd.f32 %v549, %v550
      %v552 = vsel %vm310, %v541, 0.0
      %v553 = vadd.f32 %v540, %v552
      %v554 = vrot.slane %v553, 4
      %v555 = vadd.f32 %v553, %v554
      %v556 = vrot.slane %v555, 2
      %v557 = vadd.f32 %v555, %v556
      %v558 = vrot.slane %v557, 1
      %v559 = vadd.f32 %v557, %v558
      %v560 = vmul.f32 %v551, 0.01
      %v561 = vsub.f32 %v260, %v560
      %v562 = vmul.f32 %v559, 0.01
      %v563 = vsub.f32 %v260, %v562
      %v564 = vmul.f32 %v460, 0.01
      %v565 = vmul.f32 %v463, 0.01
      %v566 = vmul.f32 %v466, 0.01
      %v567 = vmul.f32 %v469, 0.01
      %v568 = vmul.f32 %v472, 0.01
      %v569 = vmul.f32 %v475, 0.01
      %v570 = vmul.f32 %v478, 0.01
      %v571 = vmul.f32 %v481, 0.01
      %v572 = vmul.f32 %v484, 0.01
      %v573 = vmul.f32 %v487, 0.01
      %v574 = vmul.f32 %v490, 0.01
      %v575 = vmul.f32 %v493, 0.01
      %v576 = vmul.f32 %v496, 0.01
      %v577 = vmul.f32 %v499, 0.01
      %v578 = vmul.f32 %v502, 0.01
      %v579 = vmul.f32 %v505, 0.01
      %v580 = vsub.f32 %v244, %v564
      %v581 = vsub.f32 %v245, %v565
      %v582 = vsub.f32 %v246, %v566
      %v583 = vsub.f32 %v247, %v567
      %v584 = vsub.f32 %v248, %v568
      %v585 = vsub.f32 %v249, %v569
      %v586 = vsub.f32 %v250, %v570
      %v587 = vsub.f32 %v251, %v571
      %v588 = vsub.f32 %v252, %v572
      %v589 = vsub.f32 %v253, %v573
      %v590 = vsub.f32 %v254, %v574
      %v591 = vsub.f32 %v255, %v575
      %v592 = vsub.f32 %v256, %v576
      %v593 = vsub.f32 %v257, %v577
      %v594 = vsub.f32 %v258, %v578
      %v595 = vsub.f32 %v259, %v579
      %v596 = vmul.f32 %v514, 0.01
      %v597 = vsub.f32 %v260, %v596
      %v598 = vmul.f32 %v340, 0.01
      %v599 = vsub.f32 %v260, %v598
      %v600 = vmul.f32 %v351, 0.01
      %v601 = vsub.f32 %v260, %v600
      %v602 = vperm.slane %v561, 0
      %v603 = vmul.f32 %v264, %v602
      %v604 = vmul.f32 %v269, %v602
      %v605 = vperm.slane %v563, 1
      %v606 = vadd.f32 %v603, %v605
      %v607 = vadd.f32 %v604, %v605
      %v608 = vmax.f32 %v606, 0.0
      %v609 = vmax.f32 %v607, 0.0
      %v610 = vperm.slane %v597, 2
      %611 = vmatpush.msra.mxu0 %v595
      %612 = vmatpush.msra.mxu0 %v594
      %613 = vmatpush.msra.mxu0 %v593
      %614 = vmatpush.msra.mxu0 %v592
      %615 = vmatpush.msra.mxu0 %v591
      %616 = vmatpush.msra.mxu0 %v590
      %617 = vmatpush.msra.mxu0 %v589
      %618 = vmatpush.msra.mxu0 %v588
      %619 = vmatpush.msra.mxu0 %v587
      %620 = vmatpush.msra.mxu0 %v586
      %621 = vmatpush.msra.mxu0 %v585
      %622 = vmatpush.msra.mxu0 %v584
      %623 = vmatpush.msra.mxu0 %v583
      %624 = vmatpush.msra.mxu0 %v582
      %625 = vmatpush.msra.mxu0 %v581
      %626 = vmatpush.msra.mxu0 %v580
      %627 = vmatmul.f32.gmra.mxu0 %v608
      %v628 = vpop.f32.mrf.mxu0
      %v629 = vadd.f32 %v610, %v628
      %630 = vmatmul.f32.gmra.mxu0 %v609
      %v631 = vpop.f32.mrf.mxu0
      %v632 = vadd.f32 %v610, %v631
      %633 = vdwg.mxu0
      %v634 = vmax.f32 %v629, 0.0
      %v635 = vmax.f32 %v632, 0.0
      %v636 = vperm.slane %v599, 3
      %v637 = vmul.f32 %v634, %v636
      %v638 = vmul.f32 %v635, %v636
      %639 = vadd.xlane.f32.xlu0 %v637
      %v640 = vpop.xlane.xlu0 %639
      %v641 = vsel %vm310, %v638, 0.0
      %642 = vadd.xlane.f32.xlu0 %v641
      %v643 = vpop.xlane.xlu0 %642
      %v644 = vperm.slane %v601, 4
      %v645 = vadd.f32 %v640, %v644
      %v646 = vadd.f32 %v643, %v644
      %v647 = vsub.f32 %v645, %v240
      %v648 = vsub.f32 %v646, %v241
      %v649 = vmul.f32 %v647, 0.2
      %v650 = vmul.f32 %v648, 0.2
      %652 = vset.pattern.permute.xlu0 0
      %653 = vperm.xlu0 %652, %v649
      %v654 = vpop.permute.xlu0 %653
      %657 = vset.pattern.permute.xlu0 0
      %658 = vperm.xlu0 %657, %v650
      %v659 = vpop.permute.xlu0 %658
      %v661 = vmul.f32 %v634, %v654
      %v662 = vmul.f32 %v635, %v659
      %v663 = vsel %vm310, %v662, 0.0
      %v664 = vadd.f32 %v661, %v663
      %v665 = vrot.slane %v664, 4
      %v666 = vadd.f32 %v664, %v665
      %v667 = vrot.slane %v666, 2
      %v668 = vadd.f32 %v666, %v667
      %v669 = vrot.slane %v668, 1
      %v670 = vadd.f32 %v668, %v669
      %v671 = vsel %vm341, %v649, 0.0
      %v672 = vsel %vm343, %v650, 0.0
      %v673 = vadd.f32 %v671, %v672
      %v674 = vrot.slane %v673, 4
      %v675 = vadd.f32 %v673, %v674
      %v676 = vrot.slane %v675, 2
      %v677 = vadd.f32 %v675, %v676
      %v678 = vrot.slane %v677, 1
      %v679 = vadd.f32 %v677, %v678
      %v680 = vmul.f32 %v654, %v636
      %v681 = vmul.f32 %v659, %v636
      %vm682 = vcmp.gt.f32.partialorder %v629, 0.0
      %vm683 = vcmp.gt.f32.partialorder %v632, 0.0
      %v684 = vsel %vm682, %v680, 0.0
      %v685 = vsel %vm683, %v681, 0.0
      %686 = vxpose.xlu0.b32.start [1/16] %v608, 128
      %687 = vxpose.xlu0.b32.cont [2/16] %v609, 128
      %688 = vxpose.xlu0.b32.cont [3/16] 0.0, 128
      %689 = vxpose.xlu0.b32.cont [4/16] 0.0, 128
      %690 = vxpose.xlu0.b32.cont [5/16] 0.0, 128
      %691 = vxpose.xlu0.b32.cont [6/16] 0.0, 128
      %692 = vxpose.xlu0.b32.cont [7/16] 0.0, 128
      %693 = vxpose.xlu0.b32.cont [8/16] 0.0, 128
      %694 = vxpose.xlu0.b32.cont [9/16] 0.0, 128
      %695 = vxpose.xlu0.b32.cont [10/16] 0.0, 128
      %696 = vxpose.xlu0.b32.cont [11/16] 0.0, 128
      %697 = vxpose.xlu0.b32.cont [12/16] 0.0, 128
      %698 = vxpose.xlu0.b32.cont [13/16] 0.0, 128
      %699 = vxpose.xlu0.b32.cont [14/16] 0.0, 128
      %700 = vxpose.xlu0.b32.cont [15/16] 0.0, 128
      %701 = vxpose.xlu0.b32.end [16/16] 0.0, 128
      %v702 = vpop.trf.xlu0
      %v703 = vpop.trf.xlu0
      %v704 = vpop.trf.xlu0
      %v705 = vpop.trf.xlu0
      %v706 = vpop.trf.xlu0
      %v707 = vpop.trf.xlu0
      %v708 = vpop.trf.xlu0
      %v709 = vpop.trf.xlu0
      %v710 = vpop.trf.xlu0
      %v711 = vpop.trf.xlu0
      %v712 = vpop.trf.xlu0
      %v713 = vpop.trf.xlu0
      %v714 = vpop.trf.xlu0
      %v715 = vpop.trf.xlu0
      %v716 = vpop.trf.xlu0
      %v717 = vpop.trf.xlu0
      %v719 = vsel %vm390, %v702, 0
      %v722 = vsel %vm390, %v703, 0
      %v725 = vsel %vm390, %v704, 0
      %v728 = vsel %vm390, %v705, 0
      %v731 = vsel %vm390, %v706, 0
      %v734 = vsel %vm390, %v707, 0
      %v737 = vsel %vm390, %v708, 0
      %v740 = vsel %vm390, %v709, 0
      %v743 = vsel %vm390, %v710, 0
      %v746 = vsel %vm390, %v711, 0
      %v749 = vsel %vm390, %v712, 0
      %v752 = vsel %vm390, %v713, 0
      %v755 = vsel %vm390, %v714, 0
      %v758 = vsel %vm390, %v715, 0
      %v761 = vsel %vm390, %v716, 0
      %v764 = vsel %vm390, %v717, 0
      %v767 = vsel %vm310, %v685, 0
      %769 = vmatpush.msra.mxu0 0.0
      %770 = vmatpush.msra.mxu0 0.0
      %771 = vmatpush.msra.mxu0 0.0
      %772 = vmatpush.msra.mxu0 0.0
      %773 = vmatpush.msra.mxu0 0.0
      %774 = vmatpush.msra.mxu0 0.0
      %775 = vmatpush.msra.mxu0 0.0
      %776 = vmatpush.msra.mxu0 0.0
      %777 = vmatpush.msra.mxu0 0.0
      %778 = vmatpush.msra.mxu0 0.0
      %779 = vmatpush.msra.mxu0 0.0
      %780 = vmatpush.msra.mxu0 0.0
      %781 = vmatpush.msra.mxu0 0.0
      %782 = vmatpush.msra.mxu0 0.0
      %783 = vmatpush.msra.mxu0 %v767
      %784 = vmatpush.msra.mxu0 %v684
      %785 = vmatmul.f32.gmra.mxu0 %v719
      %v786 = vpop.f32.mrf.mxu0
      %v787 = vadd.f32 0.0, %v786
      %788 = vmatmul.f32.gmra.mxu0 %v722
      %v789 = vpop.f32.mrf.mxu0
      %v790 = vadd.f32 0.0, %v789
      %791 = vmatmul.f32.gmra.mxu0 %v725
      %v792 = vpop.f32.mrf.mxu0
      %v793 = vadd.f32 0.0, %v792
      %794 = vmatmul.f32.gmra.mxu0 %v728
      %v795 = vpop.f32.mrf.mxu0
      %v796 = vadd.f32 0.0, %v795
      %797 = vmatmul.f32.gmra.mxu0 %v731
      %v798 = vpop.f32.mrf.mxu0
      %v799 = vadd.f32 0.0, %v798
      %800 = vmatmul.f32.gmra.mxu0 %v734
      %v801 = vpop.f32.mrf.mxu0
      %v802 = vadd.f32 0.0, %v801
      %803 = vmatmul.f32.gmra.mxu0 %v737
      %v804 = vpop.f32.mrf.mxu0
      %v805 = vadd.f32 0.0, %v804
      %806 = vmatmul.f32.gmra.mxu0 %v740
      %v807 = vpop.f32.mrf.mxu0
      %v808 = vadd.f32 0.0, %v807
      %809 = vmatmul.f32.gmra.mxu0 %v743
      %v810 = vpop.f32.mrf.mxu0
      %v811 = vadd.f32 0.0, %v810
      %812 = vmatmul.f32.gmra.mxu0 %v746
      %v813 = vpop.f32.mrf.mxu0
      %v814 = vadd.f32 0.0, %v813
      %815 = vmatmul.f32.gmra.mxu0 %v749
      %v816 = vpop.f32.mrf.mxu0
      %v817 = vadd.f32 0.0, %v816
      %818 = vmatmul.f32.gmra.mxu0 %v752
      %v819 = vpop.f32.mrf.mxu0
      %v820 = vadd.f32 0.0, %v819
      %821 = vmatmul.f32.gmra.mxu0 %v755
      %v822 = vpop.f32.mrf.mxu0
      %v823 = vadd.f32 0.0, %v822
      %824 = vmatmul.f32.gmra.mxu0 %v758
      %v825 = vpop.f32.mrf.mxu0
      %v826 = vadd.f32 0.0, %v825
      %827 = vmatmul.f32.gmra.mxu0 %v761
      %v828 = vpop.f32.mrf.mxu0
      %v829 = vadd.f32 0.0, %v828
      %830 = vmatmul.f32.gmra.mxu0 %v764
      %v831 = vpop.f32.mrf.mxu0
      %v832 = vadd.f32 0.0, %v831
      %833 = vdwg.mxu0
      %v834 = vsel %vm310, %v685, 0.0
      %v835 = vadd.f32 %v684, %v834
      %v836 = vrot.slane %v835, 4
      %v837 = vadd.f32 %v835, %v836
      %v838 = vrot.slane %v837, 2
      %v839 = vadd.f32 %v837, %v838
      %v840 = vrot.slane %v839, 1
      %v841 = vadd.f32 %v839, %v840
      %842 = vmatpush.xpose.msra.mxu0 %v595
      %843 = vmatpush.xpose.msra.mxu0 %v594
      %844 = vmatpush.xpose.msra.mxu0 %v593
      %845 = vmatpush.xpose.msra.mxu0 %v592
      %846 = vmatpush.xpose.msra.mxu0 %v591
      %847 = vmatpush.xpose.msra.mxu0 %v590
      %848 = vmatpush.xpose.msra.mxu0 %v589
      %849 = vmatpush.xpose.msra.mxu0 %v588
      %850 = vmatpush.xpose.msra.mxu0 %v587
      %851 = vmatpush.xpose.msra.mxu0 %v586
      %852 = vmatpush.xpose.msra.mxu0 %v585
      %853 = vmatpush.xpose.msra.mxu0 %v584
      %854 = vmatpush.xpose.msra.mxu0 %v583
      %855 = vmatpush.xpose.msra.mxu0 %v582
      %856 = vmatpush.xpose.msra.mxu0 %v581
      %857 = vmatpush.xpose.msra.mxu0 %v580
      %858 = vmatmul.f32.gmra.mxu0 %v684
      %v859 = vpop.f32.mrf.mxu0
      %v860 = vadd.f32 0.0, %v859
      %861 = vmatmul.f32.gmra.mxu0 %v685
      %v862 = vpop.f32.mrf.mxu0
      %v863 = vadd.f32 0.0, %v862
      %864 = vdwg.mxu0
      %vm865 = vcmp.gt.f32.partialorder %v606, 0.0
      %vm866 = vcmp.gt.f32.partialorder %v607, 0.0
      %v867 = vsel %vm865, %v860, 0.0
      %v868 = vsel %vm866, %v863, 0.0
      %v869 = vmul.f32 %v264, %v867
      %v870 = vmul.f32 %v269, %v868
      %v871 = vsel %vm310, %v870, 0.0
      %v872 = vadd.f32 %v869, %v871
      %v873 = vrot.slane %v872, 4
      %v874 = vadd.f32 %v872, %v873
      %v875 = vrot.slane %v874, 2
      %v876 = vadd.f32 %v874, %v875
      %v877 = vrot.slane %v876, 1
      %v878 = vadd.f32 %v876, %v877
      %v879 = vsel %vm310, %v868, 0.0
      %v880 = vadd.f32 %v867, %v879
      %v881 = vrot.slane %v880, 4
      %v882 = vadd.f32 %v880, %v881
      %v883 = vrot.slane %v882, 2
      %v884 = vadd.f32 %v882, %v883
      %v885 = vrot.slane %v884, 1
      %v886 = vadd.f32 %v884, %v885
      %v887 = vmul.f32 %v878, 0.01
      %v888 = vsub.f32 %v561, %v887
      %v889 = vmul.f32 %v886, 0.01
      %v890 = vsub.f32 %v563, %v889
      %v891 = vmul.f32 %v787, 0.01
      %v892 = vmul.f32 %v790, 0.01
      %v893 = vmul.f32 %v793, 0.01
      %v894 = vmul.f32 %v796, 0.01
      %v895 = vmul.f32 %v799, 0.01
      %v896 = vmul.f32 %v802, 0.01
      %v897 = vmul.f32 %v805, 0.01
      %v898 = vmul.f32 %v808, 0.01
      %v899 = vmul.f32 %v811, 0.01
      %v900 = vmul.f32 %v814, 0.01
      %v901 = vmul.f32 %v817, 0.01
      %v902 = vmul.f32 %v820, 0.01
      %v903 = vmul.f32 %v823, 0.01
      %v904 = vmul.f32 %v826, 0.01
      %v905 = vmul.f32 %v829, 0.01
      %v906 = vmul.f32 %v832, 0.01
      %v907 = vsub.f32 %v580, %v891
      %v908 = vsub.f32 %v581, %v892
      %v909 = vsub.f32 %v582, %v893
      %v910 = vsub.f32 %v583, %v894
      %v911 = vsub.f32 %v584, %v895
      %v912 = vsub.f32 %v585, %v896
      %v913 = vsub.f32 %v586, %v897
      %v914 = vsub.f32 %v587, %v898
      %v915 = vsub.f32 %v588, %v899
      %v916 = vsub.f32 %v589, %v900
      %v917 = vsub.f32 %v590, %v901
      %v918 = vsub.f32 %v591, %v902
      %v919 = vsub.f32 %v592, %v903
      %v920 = vsub.f32 %v593, %v904
      %v921 = vsub.f32 %v594, %v905
      %v922 = vsub.f32 %v595, %v906
      %v923 = vmul.f32 %v841, 0.01
      %v924 = vsub.f32 %v597, %v923
      %v925 = vmul.f32 %v670, 0.01
      %v926 = vsub.f32 %v599, %v925
      %v927 = vmul.f32 %v679, 0.01
      %v928 = vsub.f32 %v601, %v927
      %v929 = vperm.slane %v888, 0
      %v930 = vmul.f32 %v264, %v929
      %v931 = vmul.f32 %v269, %v929
      %v932 = vperm.slane %v890, 1
      %v933 = vadd.f32 %v930, %v932
      %v934 = vadd.f32 %v931, %v932
      %v935 = vmax.f32 %v933, 0.0
      %v936 = vmax.f32 %v934, 0.0
      %v937 = vperm.slane %v924, 2
      %938 = vmatpush.msra.mxu0 %v922
      %939 = vmatpush.msra.mxu0 %v921
      %940 = vmatpush.msra.mxu0 %v920
      %941 = vmatpush.msra.mxu0 %v919
      %942 = vmatpush.msra.mxu0 %v918
      %943 = vmatpush.msra.mxu0 %v917
      %944 = vmatpush.msra.mxu0 %v916
      %945 = vmatpush.msra.mxu0 %v915
      %946 = vmatpush.msra.mxu0 %v914
      %947 = vmatpush.msra.mxu0 %v913
      %948 = vmatpush.msra.mxu0 %v912
      %949 = vmatpush.msra.mxu0 %v911
      %950 = vmatpush.msra.mxu0 %v910
      %951 = vmatpush.msra.mxu0 %v909
      %952 = vmatpush.msra.mxu0 %v908
      %953 = vmatpush.msra.mxu0 %v907
      %954 = vmatmul.f32.gmra.mxu0 %v935
      %v955 = vpop.f32.mrf.mxu0
      %v956 = vadd.f32 %v937, %v955
      %957 = vmatmul.f32.gmra.mxu0 %v936
      %v958 = vpop.f32.mrf.mxu0
      %v959 = vadd.f32 %v937, %v958
      %960 = vdwg.mxu0
      %v961 = vmax.f32 %v956, 0.0
      %v962 = vmax.f32 %v959, 0.0
      %v963 = vperm.slane %v926, 3
      %v964 = vmul.f32 %v961, %v963
      %v965 = vmul.f32 %v962, %v963
      %966 = vadd.xlane.f32.xlu0 %v964
      %v967 = vpop.xlane.xlu0 %966
      %v968 = vsel %vm310, %v965, 0.0
      %969 = vadd.xlane.f32.xlu0 %v968
      %v970 = vpop.xlane.xlu0 %969
      %v971 = vperm.slane %v928, 4
      %v972 = vadd.f32 %v967, %v971
      %v973 = vadd.f32 %v970, %v971
      %v974 = vsub.f32 %v972, %v240
      %v975 = vsub.f32 %v973, %v241
      %v976 = vmul.f32 %v974, 0.2
      %v977 = vmul.f32 %v975, 0.2
      %979 = vset.pattern.permute.xlu0 0
      %980 = vperm.xlu0 %979, %v976
      %v981 = vpop.permute.xlu0 %980
      %984 = vset.pattern.permute.xlu0 0
      %985 = vperm.xlu0 %984, %v977
      %v986 = vpop.permute.xlu0 %985
      %v988 = vmul.f32 %v961, %v981
      %v989 = vmul.f32 %v962, %v986
      %v990 = vsel %vm310, %v989, 0.0
      %v991 = vadd.f32 %v988, %v990
      %v992 = vrot.slane %v991, 4
      %v993 = vadd.f32 %v991, %v992
      %v994 = vrot.slane %v993, 2
      %v995 = vadd.f32 %v993, %v994
      %v996 = vrot.slane %v995, 1
      %v997 = vadd.f32 %v995, %v996
      %v998 = vsel %vm341, %v976, 0.0
      %v999 = vsel %vm343, %v977, 0.0
      %v1000 = vadd.f32 %v998, %v999
      %v1001 = vrot.slane %v1000, 4
      %v1002 = vadd.f32 %v1000, %v1001
      %v1003 = vrot.slane %v1002, 2
      %v1004 = vadd.f32 %v1002, %v1003
      %v1005 = vrot.slane %v1004, 1
      %v1006 = vadd.f32 %v1004, %v1005
      %v1007 = vmul.f32 %v981, %v963
      %v1008 = vmul.f32 %v986, %v963
      %vm1009 = vcmp.gt.f32.partialorder %v956, 0.0
      %vm1010 = vcmp.gt.f32.partialorder %v959, 0.0
      %v1011 = vsel %vm1009, %v1007, 0.0
      %v1012 = vsel %vm1010, %v1008, 0.0
      %1013 = vxpose.xlu0.b32.start [1/16] %v935, 128
      %1014 = vxpose.xlu0.b32.cont [2/16] %v936, 128
      %1015 = vxpose.xlu0.b32.cont [3/16] 0.0, 128
      %1016 = vxpose.xlu0.b32.cont [4/16] 0.0, 128
      %1017 = vxpose.xlu0.b32.cont [5/16] 0.0, 128
      %1018 = vxpose.xlu0.b32.cont [6/16] 0.0, 128
      %1019 = vxpose.xlu0.b32.cont [7/16] 0.0, 128
      %1020 = vxpose.xlu0.b32.cont [8/16] 0.0, 128
      %1021 = vxpose.xlu0.b32.cont [9/16] 0.0, 128
      %1022 = vxpose.xlu0.b32.cont [10/16] 0.0, 128
      %1023 = vxpose.xlu0.b32.cont [11/16] 0.0, 128
      %1024 = vxpose.xlu0.b32.cont [12/16] 0.0, 128
      %1025 = vxpose.xlu0.b32.cont [13/16] 0.0, 128
      %1026 = vxpose.xlu0.b32.cont [14/16] 0.0, 128
      %1027 = vxpose.xlu0.b32.cont [15/16] 0.0, 128
      %1028 = vxpose.xlu0.b32.end [16/16] 0.0, 128
      %v1029 = vpop.trf.xlu0
      %v1030 = vpop.trf.xlu0
      %v1031 = vpop.trf.xlu0
      %v1032 = vpop.trf.xlu0
      %v1033 = vpop.trf.xlu0
      %v1034 = vpop.trf.xlu0
      %v1035 = vpop.trf.xlu0
      %v1036 = vpop.trf.xlu0
      %v1037 = vpop.trf.xlu0
      %v1038 = vpop.trf.xlu0
      %v1039 = vpop.trf.xlu0
      %v1040 = vpop.trf.xlu0
      %v1041 = vpop.trf.xlu0
      %v1042 = vpop.trf.xlu0
      %v1043 = vpop.trf.xlu0
      %v1044 = vpop.trf.xlu0
      %v1046 = vsel %vm390, %v1029, 0
      %v1049 = vsel %vm390, %v1030, 0
      %v1052 = vsel %vm390, %v1031, 0
      %v1055 = vsel %vm390, %v1032, 0
      %v1058 = vsel %vm390, %v1033, 0
      %v1061 = vsel %vm390, %v1034, 0
      %v1064 = vsel %vm390, %v1035, 0
      %v1067 = vsel %vm390, %v1036, 0
      %v1070 = vsel %vm390, %v1037, 0
      %v1073 = vsel %vm390, %v1038, 0
      %v1076 = vsel %vm390, %v1039, 0
      %v1079 = vsel %vm390, %v1040, 0
      %v1082 = vsel %vm390, %v1041, 0
      %v1085 = vsel %vm390, %v1042, 0
      %v1088 = vsel %vm390, %v1043, 0
      %v1091 = vsel %vm390, %v1044, 0
      %v1094 = vsel %vm310, %v1012, 0
      %1096 = vmatpush.msra.mxu0 0.0
      %1097 = vmatpush.msra.mxu0 0.0
      %1098 = vmatpush.msra.mxu0 0.0
      %1099 = vmatpush.msra.mxu0 0.0
      %1100 = vmatpush.msra.mxu0 0.0
      %1101 = vmatpush.msra.mxu0 0.0
      %1102 = vmatpush.msra.mxu0 0.0
      %1103 = vmatpush.msra.mxu0 0.0
      %1104 = vmatpush.msra.mxu0 0.0
      %1105 = vmatpush.msra.mxu0 0.0
      %1106 = vmatpush.msra.mxu0 0.0
      %1107 = vmatpush.msra.mxu0 0.0
      %1108 = vmatpush.msra.mxu0 0.0
      %1109 = vmatpush.msra.mxu0 0.0
      %1110 = vmatpush.msra.mxu0 %v1094
      %1111 = vmatpush.msra.mxu0 %v1011
      %1112 = vmatmul.f32.gmra.mxu0 %v1046
      %v1113 = vpop.f32.mrf.mxu0
      %v1114 = vadd.f32 0.0, %v1113
      %1115 = vmatmul.f32.gmra.mxu0 %v1049
      %v1116 = vpop.f32.mrf.mxu0
      %v1117 = vadd.f32 0.0, %v1116
      %1118 = vmatmul.f32.gmra.mxu0 %v1052
      %v1119 = vpop.f32.mrf.mxu0
      %v1120 = vadd.f32 0.0, %v1119
      %1121 = vmatmul.f32.gmra.mxu0 %v1055
      %v1122 = vpop.f32.mrf.mxu0
      %v1123 = vadd.f32 0.0, %v1122
      %1124 = vmatmul.f32.gmra.mxu0 %v1058
      %v1125 = vpop.f32.mrf.mxu0
      %v1126 = vadd.f32 0.0, %v1125
      %1127 = vmatmul.f32.gmra.mxu0 %v1061
      %v1128 = vpop.f32.mrf.mxu0
      %v1129 = vadd.f32 0.0, %v1128
      %1130 = vmatmul.f32.gmra.mxu0 %v1064
      %v1131 = vpop.f32.mrf.mxu0
      %v1132 = vadd.f32 0.0, %v1131
      %1133 = vmatmul.f32.gmra.mxu0 %v1067
      %v1134 = vpop.f32.mrf.mxu0
      %v1135 = vadd.f32 0.0, %v1134
      %1136 = vmatmul.f32.gmra.mxu0 %v1070
      %v1137 = vpop.f32.mrf.mxu0
      %v1138 = vadd.f32 0.0, %v1137
      %1139 = vmatmul.f32.gmra.mxu0 %v1073
      %v1140 = vpop.f32.mrf.mxu0
      %v1141 = vadd.f32 0.0, %v1140
      %1142 = vmatmul.f32.gmra.mxu0 %v1076
      %v1143 = vpop.f32.mrf.mxu0
      %v1144 = vadd.f32 0.0, %v1143
      %1145 = vmatmul.f32.gmra.mxu0 %v1079
      %v1146 = vpop.f32.mrf.mxu0
      %v1147 = vadd.f32 0.0, %v1146
      %1148 = vmatmul.f32.gmra.mxu0 %v1082
      %v1149 = vpop.f32.mrf.mxu0
      %v1150 = vadd.f32 0.0, %v1149
      %1151 = vmatmul.f32.gmra.mxu0 %v1085
      %v1152 = vpop.f32.mrf.mxu0
      %v1153 = vadd.f32 0.0, %v1152
      %1154 = vmatmul.f32.gmra.mxu0 %v1088
      %v1155 = vpop.f32.mrf.mxu0
      %v1156 = vadd.f32 0.0, %v1155
      %1157 = vmatmul.f32.gmra.mxu0 %v1091
      %v1158 = vpop.f32.mrf.mxu0
      %v1159 = vadd.f32 0.0, %v1158
      %1160 = vdwg.mxu0
      %v1161 = vsel %vm310, %v1012, 0.0
      %v1162 = vadd.f32 %v1011, %v1161
      %v1163 = vrot.slane %v1162, 4
      %v1164 = vadd.f32 %v1162, %v1163
      %v1165 = vrot.slane %v1164, 2
      %v1166 = vadd.f32 %v1164, %v1165
      %v1167 = vrot.slane %v1166, 1
      %v1168 = vadd.f32 %v1166, %v1167
      %1169 = vmatpush.xpose.msra.mxu0 %v922
      %1170 = vmatpush.xpose.msra.mxu0 %v921
      %1171 = vmatpush.xpose.msra.mxu0 %v920
      %1172 = vmatpush.xpose.msra.mxu0 %v919
      %1173 = vmatpush.xpose.msra.mxu0 %v918
      %1174 = vmatpush.xpose.msra.mxu0 %v917
      %1175 = vmatpush.xpose.msra.mxu0 %v916
      %1176 = vmatpush.xpose.msra.mxu0 %v915
      %1177 = vmatpush.xpose.msra.mxu0 %v914
      %1178 = vmatpush.xpose.msra.mxu0 %v913
      %1179 = vmatpush.xpose.msra.mxu0 %v912
      %1180 = vmatpush.xpose.msra.mxu0 %v911
      %1181 = vmatpush.xpose.msra.mxu0 %v910
      %1182 = vmatpush.xpose.msra.mxu0 %v909
      %1183 = vmatpush.xpose.msra.mxu0 %v908
      %1184 = vmatpush.xpose.msra.mxu0 %v907
      %1185 = vmatmul.f32.gmra.mxu0 %v1011
      %v1186 = vpop.f32.mrf.mxu0
      %v1187 = vadd.f32 0.0, %v1186
      %1188 = vmatmul.f32.gmra.mxu0 %v1012
      %v1189 = vpop.f32.mrf.mxu0
      %v1190 = vadd.f32 0.0, %v1189
      %1191 = vdwg.mxu0
      %vm1192 = vcmp.gt.f32.partialorder %v933, 0.0
      %vm1193 = vcmp.gt.f32.partialorder %v934, 0.0
      %v1194 = vsel %vm1192, %v1187, 0.0
      %v1195 = vsel %vm1193, %v1190, 0.0
      %v1196 = vmul.f32 %v264, %v1194
      %v1197 = vmul.f32 %v269, %v1195
      %v1198 = vsel %vm310, %v1197, 0.0
      %v1199 = vadd.f32 %v1196, %v1198
      %v1200 = vrot.slane %v1199, 4
      %v1201 = vadd.f32 %v1199, %v1200
      %v1202 = vrot.slane %v1201, 2
      %v1203 = vadd.f32 %v1201, %v1202
      %v1204 = vrot.slane %v1203, 1
      %v1205 = vadd.f32 %v1203, %v1204
      %v1206 = vsel %vm310, %v1195, 0.0
      %v1207 = vadd.f32 %v1194, %v1206
      %v1208 = vrot.slane %v1207, 4
      %v1209 = vadd.f32 %v1207, %v1208
      %v1210 = vrot.slane %v1209, 2
      %v1211 = vadd.f32 %v1209, %v1210
      %v1212 = vrot.slane %v1211, 1
      %v1213 = vadd.f32 %v1211, %v1212
      %v1214 = vmul.f32 %v1205, 0.01
      %v1215 = vsub.f32 %v888, %v1214
      %v1216 = vmul.f32 %v1213, 0.01
      %v1217 = vsub.f32 %v890, %v1216
      %v1218 = vmul.f32 %v1114, 0.01
      %v1219 = vmul.f32 %v1117, 0.01
      %v1220 = vmul.f32 %v1120, 0.01
      %v1221 = vmul.f32 %v1123, 0.01
      %v1222 = vmul.f32 %v1126, 0.01
      %v1223 = vmul.f32 %v1129, 0.01
      %v1224 = vmul.f32 %v1132, 0.01
      %v1225 = vmul.f32 %v1135, 0.01
      %v1226 = vmul.f32 %v1138, 0.01
      %v1227 = vmul.f32 %v1141, 0.01
      %v1228 = vmul.f32 %v1144, 0.01
      %v1229 = vmul.f32 %v1147, 0.01
      %v1230 = vmul.f32 %v1150, 0.01
      %v1231 = vmul.f32 %v1153, 0.01
      %v1232 = vmul.f32 %v1156, 0.01
      %v1233 = vmul.f32 %v1159, 0.01
      %v1234 = vsub.f32 %v907, %v1218
      %v1235 = vsub.f32 %v908, %v1219
      %v1236 = vsub.f32 %v909, %v1220
      %v1237 = vsub.f32 %v910, %v1221
      %v1238 = vsub.f32 %v911, %v1222
      %v1239 = vsub.f32 %v912, %v1223
      %v1240 = vsub.f32 %v913, %v1224
      %v1241 = vsub.f32 %v914, %v1225
      %v1242 = vsub.f32 %v915, %v1226
      %v1243 = vsub.f32 %v916, %v1227
      %v1244 = vsub.f32 %v917, %v1228
      %v1245 = vsub.f32 %v918, %v1229
      %v1246 = vsub.f32 %v919, %v1230
      %v1247 = vsub.f32 %v920, %v1231
      %v1248 = vsub.f32 %v921, %v1232
      %v1249 = vsub.f32 %v922, %v1233
      %v1250 = vmul.f32 %v1168, 0.01
      %v1251 = vsub.f32 %v924, %v1250
      %v1252 = vmul.f32 %v997, 0.01
      %v1253 = vsub.f32 %v926, %v1252
      %v1254 = vmul.f32 %v1006, 0.01
      %v1255 = vsub.f32 %v928, %v1254
      %v1256 = vperm.slane %v1215, 0
      %v1257 = vmul.f32 %v264, %v1256
      %v1258 = vmul.f32 %v269, %v1256
      %v1259 = vperm.slane %v1217, 1
      %v1260 = vadd.f32 %v1257, %v1259
      %v1261 = vadd.f32 %v1258, %v1259
      %v1262 = vmax.f32 %v1260, 0.0
      %v1263 = vmax.f32 %v1261, 0.0
      %v1264 = vperm.slane %v1251, 2
      %1265 = vmatpush.msra.mxu0 %v1249
      %1266 = vmatpush.msra.mxu0 %v1248
      %1267 = vmatpush.msra.mxu0 %v1247
      %1268 = vmatpush.msra.mxu0 %v1246
      %1269 = vmatpush.msra.mxu0 %v1245
      %1270 = vmatpush.msra.mxu0 %v1244
      %1271 = vmatpush.msra.mxu0 %v1243
      %1272 = vmatpush.msra.mxu0 %v1242
      %1273 = vmatpush.msra.mxu0 %v1241
      %1274 = vmatpush.msra.mxu0 %v1240
      %1275 = vmatpush.msra.mxu0 %v1239
      %1276 = vmatpush.msra.mxu0 %v1238
      %1277 = vmatpush.msra.mxu0 %v1237
      %1278 = vmatpush.msra.mxu0 %v1236
      %1279 = vmatpush.msra.mxu0 %v1235
      %1280 = vmatpush.msra.mxu0 %v1234
      %1281 = vmatmul.f32.gmra.mxu0 %v1262
      %v1282 = vpop.f32.mrf.mxu0
      %v1283 = vadd.f32 %v1264, %v1282
      %1284 = vmatmul.f32.gmra.mxu0 %v1263
      %v1285 = vpop.f32.mrf.mxu0
      %v1286 = vadd.f32 %v1264, %v1285
      %1287 = vdwg.mxu0
      %v1288 = vmax.f32 %v1283, 0.0
      %v1289 = vmax.f32 %v1286, 0.0
      %v1290 = vperm.slane %v1253, 3
      %v1291 = vmul.f32 %v1288, %v1290
      %v1292 = vmul.f32 %v1289, %v1290
      %1293 = vadd.xlane.f32.xlu0 %v1291
      %v1294 = vpop.xlane.xlu0 %1293
      %v1295 = vsel %vm310, %v1292, 0.0
      %1296 = vadd.xlane.f32.xlu0 %v1295
      %v1297 = vpop.xlane.xlu0 %1296
      %v1298 = vperm.slane %v1255, 4
      %v1299 = vadd.f32 %v1294, %v1298
      %v1300 = vadd.f32 %v1297, %v1298
      %v1301 = vsub.f32 %v1299, %v240
      %v1302 = vsub.f32 %v1300, %v241
      %v1303 = vmul.f32 %v1301, 0.2
      %v1304 = vmul.f32 %v1302, 0.2
      %1306 = vset.pattern.permute.xlu0 0
      %1307 = vperm.xlu0 %1306, %v1303
      %v1308 = vpop.permute.xlu0 %1307
      %1311 = vset.pattern.permute.xlu0 0
      %1312 = vperm.xlu0 %1311, %v1304
      %v1313 = vpop.permute.xlu0 %1312
      %v1315 = vmul.f32 %v1288, %v1308
      %v1316 = vmul.f32 %v1289, %v1313
      %v1317 = vsel %vm310, %v1316, 0.0
      %v1318 = vadd.f32 %v1315, %v1317
      %v1319 = vrot.slane %v1318, 4
      %v1320 = vadd.f32 %v1318, %v1319
      %v1321 = vrot.slane %v1320, 2
      %v1322 = vadd.f32 %v1320, %v1321
      %v1323 = vrot.slane %v1322, 1
      %v1324 = vadd.f32 %v1322, %v1323
      %v1325 = vsel %vm341, %v1303, 0.0
      %v1326 = vsel %vm343, %v1304, 0.0
      %v1327 = vadd.f32 %v1325, %v1326
      %v1328 = vrot.slane %v1327, 4
      %v1329 = vadd.f32 %v1327, %v1328
      %v1330 = vrot.slane %v1329, 2
      %v1331 = vadd.f32 %v1329, %v1330
      %v1332 = vrot.slane %v1331, 1
      %v1333 = vadd.f32 %v1331, %v1332
      %v1334 = vmul.f32 %v1308, %v1290
      %v1335 = vmul.f32 %v1313, %v1290
      %vm1336 = vcmp.gt.f32.partialorder %v1283, 0.0
      %vm1337 = vcmp.gt.f32.partialorder %v1286, 0.0
      %v1338 = vsel %vm1336, %v1334, 0.0
      %v1339 = vsel %vm1337, %v1335, 0.0
      %1340 = vxpose.xlu0.b32.start [1/16] %v1262, 128
      %1341 = vxpose.xlu0.b32.cont [2/16] %v1263, 128
      %1342 = vxpose.xlu0.b32.cont [3/16] 0.0, 128
      %1343 = vxpose.xlu0.b32.cont [4/16] 0.0, 128
      %1344 = vxpose.xlu0.b32.cont [5/16] 0.0, 128
      %1345 = vxpose.xlu0.b32.cont [6/16] 0.0, 128
      %1346 = vxpose.xlu0.b32.cont [7/16] 0.0, 128
      %1347 = vxpose.xlu0.b32.cont [8/16] 0.0, 128
      %1348 = vxpose.xlu0.b32.cont [9/16] 0.0, 128
      %1349 = vxpose.xlu0.b32.cont [10/16] 0.0, 128
      %1350 = vxpose.xlu0.b32.cont [11/16] 0.0, 128
      %1351 = vxpose.xlu0.b32.cont [12/16] 0.0, 128
      %1352 = vxpose.xlu0.b32.cont [13/16] 0.0, 128
      %1353 = vxpose.xlu0.b32.cont [14/16] 0.0, 128
      %1354 = vxpose.xlu0.b32.cont [15/16] 0.0, 128
      %1355 = vxpose.xlu0.b32.end [16/16] 0.0, 128
      %v1356 = vpop.trf.xlu0
      %v1357 = vpop.trf.xlu0
      %v1358 = vpop.trf.xlu0
      %v1359 = vpop.trf.xlu0
      %v1360 = vpop.trf.xlu0
      %v1361 = vpop.trf.xlu0
      %v1362 = vpop.trf.xlu0
      %v1363 = vpop.trf.xlu0
      %v1364 = vpop.trf.xlu0
      %v1365 = vpop.trf.xlu0
      %v1366 = vpop.trf.xlu0
      %v1367 = vpop.trf.xlu0
      %v1368 = vpop.trf.xlu0
      %v1369 = vpop.trf.xlu0
      %v1370 = vpop.trf.xlu0
      %v1371 = vpop.trf.xlu0
      %v1373 = vsel %vm390, %v1356, 0
      %v1376 = vsel %vm390, %v1357, 0
      %v1379 = vsel %vm390, %v1358, 0
      %v1382 = vsel %vm390, %v1359, 0
      %v1385 = vsel %vm390, %v1360, 0
      %v1388 = vsel %vm390, %v1361, 0
      %v1391 = vsel %vm390, %v1362, 0
      %v1394 = vsel %vm390, %v1363, 0
      %v1397 = vsel %vm390, %v1364, 0
      %v1400 = vsel %vm390, %v1365, 0
      %v1403 = vsel %vm390, %v1366, 0
      %v1406 = vsel %vm390, %v1367, 0
      %v1409 = vsel %vm390, %v1368, 0
      %v1412 = vsel %vm390, %v1369, 0
      %v1415 = vsel %vm390, %v1370, 0
      %v1418 = vsel %vm390, %v1371, 0
      %v1421 = vsel %vm310, %v1339, 0
      %1423 = vmatpush.msra.mxu0 0.0
      %1424 = vmatpush.msra.mxu0 0.0
      %1425 = vmatpush.msra.mxu0 0.0
      %1426 = vmatpush.msra.mxu0 0.0
      %1427 = vmatpush.msra.mxu0 0.0
      %1428 = vmatpush.msra.mxu0 0.0
      %1429 = vmatpush.msra.mxu0 0.0
      %1430 = vmatpush.msra.mxu0 0.0
      %1431 = vmatpush.msra.mxu0 0.0
      %1432 = vmatpush.msra.mxu0 0.0
      %1433 = vmatpush.msra.mxu0 0.0
      %1434 = vmatpush.msra.mxu0 0.0
      %1435 = vmatpush.msra.mxu0 0.0
      %1436 = vmatpush.msra.mxu0 0.0
      %1437 = vmatpush.msra.mxu0 %v1421
      %1438 = vmatpush.msra.mxu0 %v1338
      %1439 = vmatmul.f32.gmra.mxu0 %v1373
      %v1440 = vpop.f32.mrf.mxu0
      %v1441 = vadd.f32 0.0, %v1440
      %1442 = vmatmul.f32.gmra.mxu0 %v1376
      %v1443 = vpop.f32.mrf.mxu0
      %v1444 = vadd.f32 0.0, %v1443
      %1445 = vmatmul.f32.gmra.mxu0 %v1379
      %v1446 = vpop.f32.mrf.mxu0
      %v1447 = vadd.f32 0.0, %v1446
      %1448 = vmatmul.f32.gmra.mxu0 %v1382
      %v1449 = vpop.f32.mrf.mxu0
      %v1450 = vadd.f32 0.0, %v1449
      %1451 = vmatmul.f32.gmra.mxu0 %v1385
      %v1452 = vpop.f32.mrf.mxu0
      %v1453 = vadd.f32 0.0, %v1452
      %1454 = vmatmul.f32.gmra.mxu0 %v1388
      %v1455 = vpop.f32.mrf.mxu0
      %v1456 = vadd.f32 0.0, %v1455
      %1457 = vmatmul.f32.gmra.mxu0 %v1391
      %v1458 = vpop.f32.mrf.mxu0
      %v1459 = vadd.f32 0.0, %v1458
      %1460 = vmatmul.f32.gmra.mxu0 %v1394
      %v1461 = vpop.f32.mrf.mxu0
      %v1462 = vadd.f32 0.0, %v1461
      %1463 = vmatmul.f32.gmra.mxu0 %v1397
      %v1464 = vpop.f32.mrf.mxu0
      %v1465 = vadd.f32 0.0, %v1464
      %1466 = vmatmul.f32.gmra.mxu0 %v1400
      %v1467 = vpop.f32.mrf.mxu0
      %v1468 = vadd.f32 0.0, %v1467
      %1469 = vmatmul.f32.gmra.mxu0 %v1403
      %v1470 = vpop.f32.mrf.mxu0
      %v1471 = vadd.f32 0.0, %v1470
      %1472 = vmatmul.f32.gmra.mxu0 %v1406
      %v1473 = vpop.f32.mrf.mxu0
      %v1474 = vadd.f32 0.0, %v1473
      %1475 = vmatmul.f32.gmra.mxu0 %v1409
      %v1476 = vpop.f32.mrf.mxu0
      %v1477 = vadd.f32 0.0, %v1476
      %1478 = vmatmul.f32.gmra.mxu0 %v1412
      %v1479 = vpop.f32.mrf.mxu0
      %v1480 = vadd.f32 0.0, %v1479
      %1481 = vmatmul.f32.gmra.mxu0 %v1415
      %v1482 = vpop.f32.mrf.mxu0
      %v1483 = vadd.f32 0.0, %v1482
      %1484 = vmatmul.f32.gmra.mxu0 %v1418
      %v1485 = vpop.f32.mrf.mxu0
      %v1486 = vadd.f32 0.0, %v1485
      %1487 = vdwg.mxu0
      %v1488 = vsel %vm310, %v1339, 0.0
      %v1489 = vadd.f32 %v1338, %v1488
      %v1490 = vrot.slane %v1489, 4
      %v1491 = vadd.f32 %v1489, %v1490
      %v1492 = vrot.slane %v1491, 2
      %v1493 = vadd.f32 %v1491, %v1492
      %v1494 = vrot.slane %v1493, 1
      %v1495 = vadd.f32 %v1493, %v1494
      %1496 = vmatpush.xpose.msra.mxu0 %v1249
      %1497 = vmatpush.xpose.msra.mxu0 %v1248
      %1498 = vmatpush.xpose.msra.mxu0 %v1247
      %1499 = vmatpush.xpose.msra.mxu0 %v1246
      %1500 = vmatpush.xpose.msra.mxu0 %v1245
      %1501 = vmatpush.xpose.msra.mxu0 %v1244
      %1502 = vmatpush.xpose.msra.mxu0 %v1243
      %1503 = vmatpush.xpose.msra.mxu0 %v1242
      %1504 = vmatpush.xpose.msra.mxu0 %v1241
      %1505 = vmatpush.xpose.msra.mxu0 %v1240
      %1506 = vmatpush.xpose.msra.mxu0 %v1239
      %1507 = vmatpush.xpose.msra.mxu0 %v1238
      %1508 = vmatpush.xpose.msra.mxu0 %v1237
      %1509 = vmatpush.xpose.msra.mxu0 %v1236
      %1510 = vmatpush.xpose.msra.mxu0 %v1235
      %1511 = vmatpush.xpose.msra.mxu0 %v1234
      %1512 = vmatmul.f32.gmra.mxu0 %v1338
      %v1513 = vpop.f32.mrf.mxu0
      %v1514 = vadd.f32 0.0, %v1513
      %1515 = vmatmul.f32.gmra.mxu0 %v1339
      %v1516 = vpop.f32.mrf.mxu0
      %v1517 = vadd.f32 0.0, %v1516
      %1518 = vdwg.mxu0
      %vm1519 = vcmp.gt.f32.partialorder %v1260, 0.0
      %vm1520 = vcmp.gt.f32.partialorder %v1261, 0.0
      %v1521 = vsel %vm1519, %v1514, 0.0
      %v1522 = vsel %vm1520, %v1517, 0.0
      %v1523 = vmul.f32 %v264, %v1521
      %v1524 = vmul.f32 %v269, %v1522
      %v1525 = vsel %vm310, %v1524, 0.0
      %v1526 = vadd.f32 %v1523, %v1525
      %v1527 = vrot.slane %v1526, 4
      %v1528 = vadd.f32 %v1526, %v1527
      %v1529 = vrot.slane %v1528, 2
      %v1530 = vadd.f32 %v1528, %v1529
      %v1531 = vrot.slane %v1530, 1
      %v1532 = vadd.f32 %v1530, %v1531
      %v1533 = vsel %vm310, %v1522, 0.0
      %v1534 = vadd.f32 %v1521, %v1533
      %v1535 = vrot.slane %v1534, 4
      %v1536 = vadd.f32 %v1534, %v1535
      %v1537 = vrot.slane %v1536, 2
      %v1538 = vadd.f32 %v1536, %v1537
      %v1539 = vrot.slane %v1538, 1
      %v1540 = vadd.f32 %v1538, %v1539
      %v1541 = vmul.f32 %v1532, 0.01
      %v1542 = vsub.f32 %v1215, %v1541
      %v1543 = vmul.f32 %v1540, 0.01
      %v1544 = vsub.f32 %v1217, %v1543
      %v1545 = vmul.f32 %v1441, 0.01
      %v1546 = vmul.f32 %v1444, 0.01
      %v1547 = vmul.f32 %v1447, 0.01
      %v1548 = vmul.f32 %v1450, 0.01
      %v1549 = vmul.f32 %v1453, 0.01
      %v1550 = vmul.f32 %v1456, 0.01
      %v1551 = vmul.f32 %v1459, 0.01
      %v1552 = vmul.f32 %v1462, 0.01
      %v1553 = vmul.f32 %v1465, 0.01
      %v1554 = vmul.f32 %v1468, 0.01
      %v1555 = vmul.f32 %v1471, 0.01
      %v1556 = vmul.f32 %v1474, 0.01
      %v1557 = vmul.f32 %v1477, 0.01
      %v1558 = vmul.f32 %v1480, 0.01
      %v1559 = vmul.f32 %v1483, 0.01
      %v1560 = vmul.f32 %v1486, 0.01
      %v1561 = vsub.f32 %v1234, %v1545
      %v1562 = vsub.f32 %v1235, %v1546
      %v1563 = vsub.f32 %v1236, %v1547
      %v1564 = vsub.f32 %v1237, %v1548
      %v1565 = vsub.f32 %v1238, %v1549
      %v1566 = vsub.f32 %v1239, %v1550
      %v1567 = vsub.f32 %v1240, %v1551
      %v1568 = vsub.f32 %v1241, %v1552
      %v1569 = vsub.f32 %v1242, %v1553
      %v1570 = vsub.f32 %v1243, %v1554
      %v1571 = vsub.f32 %v1244, %v1555
      %v1572 = vsub.f32 %v1245, %v1556
      %v1573 = vsub.f32 %v1246, %v1557
      %v1574 = vsub.f32 %v1247, %v1558
      %v1575 = vsub.f32 %v1248, %v1559
      %v1576 = vsub.f32 %v1249, %v1560
      %v1577 = vmul.f32 %v1495, 0.01
      %v1578 = vsub.f32 %v1251, %v1577
      %v1579 = vmul.f32 %v1324, 0.01
      %v1580 = vsub.f32 %v1253, %v1579
      %v1581 = vmul.f32 %v1333, 0.01
      %v1582 = vsub.f32 %v1255, %v1581
      %v1583 = vperm.slane %v1542, 0
      %v1584 = vmul.f32 %v264, %v1583
      %v1585 = vmul.f32 %v269, %v1583
      %v1586 = vperm.slane %v1544, 1
      %v1587 = vadd.f32 %v1584, %v1586
      %v1588 = vadd.f32 %v1585, %v1586
      %v1589 = vmax.f32 %v1587, 0.0
      %v1590 = vmax.f32 %v1588, 0.0
      %v1591 = vperm.slane %v1578, 2
      %1592 = vmatpush.msra.mxu0 %v1576
      %1593 = vmatpush.msra.mxu0 %v1575
      %1594 = vmatpush.msra.mxu0 %v1574
      %1595 = vmatpush.msra.mxu0 %v1573
      %1596 = vmatpush.msra.mxu0 %v1572
      %1597 = vmatpush.msra.mxu0 %v1571
      %1598 = vmatpush.msra.mxu0 %v1570
      %1599 = vmatpush.msra.mxu0 %v1569
      %1600 = vmatpush.msra.mxu0 %v1568
      %1601 = vmatpush.msra.mxu0 %v1567
      %1602 = vmatpush.msra.mxu0 %v1566
      %1603 = vmatpush.msra.mxu0 %v1565
      %1604 = vmatpush.msra.mxu0 %v1564
      %1605 = vmatpush.msra.mxu0 %v1563
      %1606 = vmatpush.msra.mxu0 %v1562
      %1607 = vmatpush.msra.mxu0 %v1561
      %1608 = vmatmul.f32.gmra.mxu0 %v1589
      %v1609 = vpop.f32.mrf.mxu0
      %v1610 = vadd.f32 %v1591, %v1609
      %1611 = vmatmul.f32.gmra.mxu0 %v1590
      %v1612 = vpop.f32.mrf.mxu0
      %v1613 = vadd.f32 %v1591, %v1612
      %1614 = vdwg.mxu0
      %v1615 = vmax.f32 %v1610, 0.0
      %v1616 = vmax.f32 %v1613, 0.0
      %v1617 = vperm.slane %v1580, 3
      %v1618 = vmul.f32 %v1615, %v1617
      %v1619 = vmul.f32 %v1616, %v1617
      %1620 = vadd.xlane.f32.xlu0 %v1618
      %v1621 = vpop.xlane.xlu0 %1620
      %v1622 = vsel %vm310, %v1619, 0.0
      %1623 = vadd.xlane.f32.xlu0 %v1622
      %v1624 = vpop.xlane.xlu0 %1623
      %v1625 = vperm.slane %v1582, 4
      %v1626 = vadd.f32 %v1621, %v1625
      %v1627 = vadd.f32 %v1624, %v1625
      %v1628 = vsub.f32 %v1626, %v240
      %v1629 = vsub.f32 %v1627, %v241
      %v1630 = vmul.f32 %v1628, 0.2
      %v1631 = vmul.f32 %v1629, 0.2
      %1633 = vset.pattern.permute.xlu0 0
      %1634 = vperm.xlu0 %1633, %v1630
      %v1635 = vpop.permute.xlu0 %1634
      %1638 = vset.pattern.permute.xlu0 0
      %1639 = vperm.xlu0 %1638, %v1631
      %v1640 = vpop.permute.xlu0 %1639
      %v1642 = vmul.f32 %v1615, %v1635
      %v1643 = vmul.f32 %v1616, %v1640
      %v1644 = vsel %vm310, %v1643, 0.0
      %v1645 = vadd.f32 %v1642, %v1644
      %v1646 = vrot.slane %v1645, 4
      %v1647 = vadd.f32 %v1645, %v1646
      %v1648 = vrot.slane %v1647, 2
      %v1649 = vadd.f32 %v1647, %v1648
      %v1650 = vrot.slane %v1649, 1
      %v1651 = vadd.f32 %v1649, %v1650
      %v1652 = vsel %vm341, %v1630, 0.0
      %v1653 = vsel %vm343, %v1631, 0.0
      %v1654 = vadd.f32 %v1652, %v1653
      %v1655 = vrot.slane %v1654, 4
      %v1656 = vadd.f32 %v1654, %v1655
      %v1657 = vrot.slane %v1656, 2
      %v1658 = vadd.f32 %v1656, %v1657
      %v1659 = vrot.slane %v1658, 1
      %v1660 = vadd.f32 %v1658, %v1659
      %v1661 = vmul.f32 %v1635, %v1617
      %v1662 = vmul.f32 %v1640, %v1617
      %vm1663 = vcmp.gt.f32.partialorder %v1610, 0.0
      %vm1664 = vcmp.gt.f32.partialorder %v1613, 0.0
      %v1665 = vsel %vm1663, %v1661, 0.0
      %v1666 = vsel %vm1664, %v1662, 0.0
      %1667 = vxpose.xlu0.b32.start [1/16] %v1589, 128
      %1668 = vxpose.xlu0.b32.cont [2/16] %v1590, 128
      %1669 = vxpose.xlu0.b32.cont [3/16] 0.0, 128
      %1670 = vxpose.xlu0.b32.cont [4/16] 0.0, 128
      %1671 = vxpose.xlu0.b32.cont [5/16] 0.0, 128
      %1672 = vxpose.xlu0.b32.cont [6/16] 0.0, 128
      %1673 = vxpose.xlu0.b32.cont [7/16] 0.0, 128
      %1674 = vxpose.xlu0.b32.cont [8/16] 0.0, 128
      %1675 = vxpose.xlu0.b32.cont [9/16] 0.0, 128
      %1676 = vxpose.xlu0.b32.cont [10/16] 0.0, 128
      %1677 = vxpose.xlu0.b32.cont [11/16] 0.0, 128
      %1678 = vxpose.xlu0.b32.cont [12/16] 0.0, 128
      %1679 = vxpose.xlu0.b32.cont [13/16] 0.0, 128
      %1680 = vxpose.xlu0.b32.cont [14/16] 0.0, 128
      %1681 = vxpose.xlu0.b32.cont [15/16] 0.0, 128
      %1682 = vxpose.xlu0.b32.end [16/16] 0.0, 128
      %v1683 = vpop.trf.xlu0
      %v1684 = vpop.trf.xlu0
      %v1685 = vpop.trf.xlu0
      %v1686 = vpop.trf.xlu0
      %v1687 = vpop.trf.xlu0
      %v1688 = vpop.trf.xlu0
      %v1689 = vpop.trf.xlu0
      %v1690 = vpop.trf.xlu0
      %v1691 = vpop.trf.xlu0
      %v1692 = vpop.trf.xlu0
      %v1693 = vpop.trf.xlu0
      %v1694 = vpop.trf.xlu0
      %v1695 = vpop.trf.xlu0
      %v1696 = vpop.trf.xlu0
      %v1697 = vpop.trf.xlu0
      %v1698 = vpop.trf.xlu0
      %v1700 = vsel %vm390, %v1683, 0
      %v1703 = vsel %vm390, %v1684, 0
      %v1706 = vsel %vm390, %v1685, 0
      %v1709 = vsel %vm390, %v1686, 0
      %v1712 = vsel %vm390, %v1687, 0
      %v1715 = vsel %vm390, %v1688, 0
      %v1718 = vsel %vm390, %v1689, 0
      %v1721 = vsel %vm390, %v1690, 0
      %v1724 = vsel %vm390, %v1691, 0
      %v1727 = vsel %vm390, %v1692, 0
      %v1730 = vsel %vm390, %v1693, 0
      %v1733 = vsel %vm390, %v1694, 0
      %v1736 = vsel %vm390, %v1695, 0
      %v1739 = vsel %vm390, %v1696, 0
      %v1742 = vsel %vm390, %v1697, 0
      %v1745 = vsel %vm390, %v1698, 0
      %v1748 = vsel %vm310, %v1666, 0
      %1750 = vmatpush.msra.mxu0 0.0
      %1751 = vmatpush.msra.mxu0 0.0
      %1752 = vmatpush.msra.mxu0 0.0
      %1753 = vmatpush.msra.mxu0 0.0
      %1754 = vmatpush.msra.mxu0 0.0
      %1755 = vmatpush.msra.mxu0 0.0
      %1756 = vmatpush.msra.mxu0 0.0
      %1757 = vmatpush.msra.mxu0 0.0
      %1758 = vmatpush.msra.mxu0 0.0
      %1759 = vmatpush.msra.mxu0 0.0
      %1760 = vmatpush.msra.mxu0 0.0
      %1761 = vmatpush.msra.mxu0 0.0
      %1762 = vmatpush.msra.mxu0 0.0
      %1763 = vmatpush.msra.mxu0 0.0
      %1764 = vmatpush.msra.mxu0 %v1748
      %1765 = vmatpush.msra.mxu0 %v1665
      %1766 = vmatmul.f32.gmra.mxu0 %v1700
      %v1767 = vpop.f32.mrf.mxu0
      %v1768 = vadd.f32 0.0, %v1767
      %1769 = vmatmul.f32.gmra.mxu0 %v1703
      %v1770 = vpop.f32.mrf.mxu0
      %v1771 = vadd.f32 0.0, %v1770
      %1772 = vmatmul.f32.gmra.mxu0 %v1706
      %v1773 = vpop.f32.mrf.mxu0
      %v1774 = vadd.f32 0.0, %v1773
      %1775 = vmatmul.f32.gmra.mxu0 %v1709
      %v1776 = vpop.f32.mrf.mxu0
      %v1777 = vadd.f32 0.0, %v1776
      %1778 = vmatmul.f32.gmra.mxu0 %v1712
      %v1779 = vpop.f32.mrf.mxu0
      %v1780 = vadd.f32 0.0, %v1779
      %1781 = vmatmul.f32.gmra.mxu0 %v1715
      %v1782 = vpop.f32.mrf.mxu0
      %v1783 = vadd.f32 0.0, %v1782
      %1784 = vmatmul.f32.gmra.mxu0 %v1718
      %v1785 = vpop.f32.mrf.mxu0
      %v1786 = vadd.f32 0.0, %v1785
      %1787 = vmatmul.f32.gmra.mxu0 %v1721
      %v1788 = vpop.f32.mrf.mxu0
      %v1789 = vadd.f32 0.0, %v1788
      %1790 = vmatmul.f32.gmra.mxu0 %v1724
      %v1791 = vpop.f32.mrf.mxu0
      %v1792 = vadd.f32 0.0, %v1791
      %1793 = vmatmul.f32.gmra.mxu0 %v1727
      %v1794 = vpop.f32.mrf.mxu0
      %v1795 = vadd.f32 0.0, %v1794
      %1796 = vmatmul.f32.gmra.mxu0 %v1730
      %v1797 = vpop.f32.mrf.mxu0
      %v1798 = vadd.f32 0.0, %v1797
      %1799 = vmatmul.f32.gmra.mxu0 %v1733
      %v1800 = vpop.f32.mrf.mxu0
      %v1801 = vadd.f32 0.0, %v1800
      %1802 = vmatmul.f32.gmra.mxu0 %v1736
      %v1803 = vpop.f32.mrf.mxu0
      %v1804 = vadd.f32 0.0, %v1803
      %1805 = vmatmul.f32.gmra.mxu0 %v1739
      %v1806 = vpop.f32.mrf.mxu0
      %v1807 = vadd.f32 0.0, %v1806
      %1808 = vmatmul.f32.gmra.mxu0 %v1742
      %v1809 = vpop.f32.mrf.mxu0
      %v1810 = vadd.f32 0.0, %v1809
      %1811 = vmatmul.f32.gmra.mxu0 %v1745
      %v1812 = vpop.f32.mrf.mxu0
      %v1813 = vadd.f32 0.0, %v1812
      %1814 = vdwg.mxu0
      %v1815 = vsel %vm310, %v1666, 0.0
      %v1816 = vadd.f32 %v1665, %v1815
      %v1817 = vrot.slane %v1816, 4
      %v1818 = vadd.f32 %v1816, %v1817
      %v1819 = vrot.slane %v1818, 2
      %v1820 = vadd.f32 %v1818, %v1819
      %v1821 = vrot.slane %v1820, 1
      %v1822 = vadd.f32 %v1820, %v1821
      %1823 = vmatpush.xpose.msra.mxu0 %v1576
      %1824 = vmatpush.xpose.msra.mxu0 %v1575
      %1825 = vmatpush.xpose.msra.mxu0 %v1574
      %1826 = vmatpush.xpose.msra.mxu0 %v1573
      %1827 = vmatpush.xpose.msra.mxu0 %v1572
      %1828 = vmatpush.xpose.msra.mxu0 %v1571
      %1829 = vmatpush.xpose.msra.mxu0 %v1570
      %1830 = vmatpush.xpose.msra.mxu0 %v1569
      %1831 = vmatpush.xpose.msra.mxu0 %v1568
      %1832 = vmatpush.xpose.msra.mxu0 %v1567
      %1833 = vmatpush.xpose.msra.mxu0 %v1566
      %1834 = vmatpush.xpose.msra.mxu0 %v1565
      %1835 = vmatpush.xpose.msra.mxu0 %v1564
      %1836 = vmatpush.xpose.msra.mxu0 %v1563
      %1837 = vmatpush.xpose.msra.mxu0 %v1562
      %1838 = vmatpush.xpose.msra.mxu0 %v1561
      %1839 = vmatmul.f32.gmra.mxu0 %v1665
      %v1840 = vpop.f32.mrf.mxu0
      %v1841 = vadd.f32 0.0, %v1840
      %1842 = vmatmul.f32.gmra.mxu0 %v1666
      %v1843 = vpop.f32.mrf.mxu0
      %v1844 = vadd.f32 0.0, %v1843
      %1845 = vdwg.mxu0
      %vm1846 = vcmp.gt.f32.partialorder %v1587, 0.0
      %vm1847 = vcmp.gt.f32.partialorder %v1588, 0.0
      %v1848 = vsel %vm1846, %v1841, 0.0
      %v1849 = vsel %vm1847, %v1844, 0.0
      %v1850 = vmul.f32 %v264, %v1848
      %v1851 = vmul.f32 %v269, %v1849
      %v1852 = vsel %vm310, %v1851, 0.0
      %v1853 = vadd.f32 %v1850, %v1852
      %v1854 = vrot.slane %v1853, 4
      %v1855 = vadd.f32 %v1853, %v1854
      %v1856 = vrot.slane %v1855, 2
      %v1857 = vadd.f32 %v1855, %v1856
      %v1858 = vrot.slane %v1857, 1
      %v1859 = vadd.f32 %v1857, %v1858
      %v1860 = vsel %vm310, %v1849, 0.0
      %v1861 = vadd.f32 %v1848, %v1860
      %v1862 = vrot.slane %v1861, 4
      %v1863 = vadd.f32 %v1861, %v1862
      %v1864 = vrot.slane %v1863, 2
      %v1865 = vadd.f32 %v1863, %v1864
      %v1866 = vrot.slane %v1865, 1
      %v1867 = vadd.f32 %v1865, %v1866
      %v1868 = vmul.f32 %v1859, 0.01
      %v1869 = vsub.f32 %v1542, %v1868
      %v1870 = vmul.f32 %v1867, 0.01
      %v1871 = vsub.f32 %v1544, %v1870
      %v1872 = vmul.f32 %v1768, 0.01
      %v1873 = vmul.f32 %v1771, 0.01
      %v1874 = vmul.f32 %v1774, 0.01
      %v1875 = vmul.f32 %v1777, 0.01
      %v1876 = vmul.f32 %v1780, 0.01
      %v1877 = vmul.f32 %v1783, 0.01
      %v1878 = vmul.f32 %v1786, 0.01
      %v1879 = vmul.f32 %v1789, 0.01
      %v1880 = vmul.f32 %v1792, 0.01
      %v1881 = vmul.f32 %v1795, 0.01
      %v1882 = vmul.f32 %v1798, 0.01
      %v1883 = vmul.f32 %v1801, 0.01
      %v1884 = vmul.f32 %v1804, 0.01
      %v1885 = vmul.f32 %v1807, 0.01
      %v1886 = vmul.f32 %v1810, 0.01
      %v1887 = vmul.f32 %v1813, 0.01
      %v1888 = vsub.f32 %v1561, %v1872
      %v1889 = vsub.f32 %v1562, %v1873
      %v1890 = vsub.f32 %v1563, %v1874
      %v1891 = vsub.f32 %v1564, %v1875
      %v1892 = vsub.f32 %v1565, %v1876
      %v1893 = vsub.f32 %v1566, %v1877
      %v1894 = vsub.f32 %v1567, %v1878
      %v1895 = vsub.f32 %v1568, %v1879
      %v1896 = vsub.f32 %v1569, %v1880
      %v1897 = vsub.f32 %v1570, %v1881
      %v1898 = vsub.f32 %v1571, %v1882
      %v1899 = vsub.f32 %v1572, %v1883
      %v1900 = vsub.f32 %v1573, %v1884
      %v1901 = vsub.f32 %v1574, %v1885
      %v1902 = vsub.f32 %v1575, %v1886
      %v1903 = vsub.f32 %v1576, %v1887
      %v1904 = vmul.f32 %v1822, 0.01
      %v1905 = vsub.f32 %v1578, %v1904
      %v1906 = vmul.f32 %v1651, 0.01
      %v1907 = vsub.f32 %v1580, %v1906
      %v1908 = vmul.f32 %v1660, 0.01
      %v1909 = vsub.f32 %v1582, %v1908
      %1911 = vset.pattern.permute.xlu0 0
      %1912 = vperm.xlu0 %1911, %v242
      %v1913 = vpop.permute.xlu0 %1912
      %1916 = vset.pattern.permute.xlu0 0
      %1917 = vperm.xlu0 %1916, %v243
      %v1918 = vpop.permute.xlu0 %1917
      %v1920 = vperm.slane %v1869, 0
      %v1921 = vmul.f32 %v1913, %v1920
      %v1922 = vmul.f32 %v1918, %v1920
      %v1923 = vperm.slane %v1871, 1
      %v1924 = vadd.f32 %v1921, %v1923
      %v1925 = vadd.f32 %v1922, %v1923
      %v1926 = vmax.f32 %v1924, 0.0
      %v1927 = vmax.f32 %v1925, 0.0
      %v1928 = vperm.slane %v1905, 2
      %1929 = vmatpush.msra.mxu0 %v1903
      %1930 = vmatpush.msra.mxu0 %v1902
      %1931 = vmatpush.msra.mxu0 %v1901
      %1932 = vmatpush.msra.mxu0 %v1900
      %1933 = vmatpush.msra.mxu0 %v1899
      %1934 = vmatpush.msra.mxu0 %v1898
      %1935 = vmatpush.msra.mxu0 %v1897
      %1936 = vmatpush.msra.mxu0 %v1896
      %1937 = vmatpush.msra.mxu0 %v1895
      %1938 = vmatpush.msra.mxu0 %v1894
      %1939 = vmatpush.msra.mxu0 %v1893
      %1940 = vmatpush.msra.mxu0 %v1892
      %1941 = vmatpush.msra.mxu0 %v1891
      %1942 = vmatpush.msra.mxu0 %v1890
      %1943 = vmatpush.msra.mxu0 %v1889
      %1944 = vmatpush.msra.mxu0 %v1888
      %1945 = vmatmul.f32.gmra.mxu0 %v1926
      %v1946 = vpop.f32.mrf.mxu0
      %v1947 = vadd.f32 %v1928, %v1946
      %1948 = vmatmul.f32.gmra.mxu0 %v1927
      %v1949 = vpop.f32.mrf.mxu0
      %v1950 = vadd.f32 %v1928, %v1949
      %1951 = vdwg.mxu0
      %v1952 = vmax.f32 %v1947, 0.0
      %v1953 = vmax.f32 %v1950, 0.0
      %v1954 = vperm.slane %v1907, 3
      %v1955 = vmul.f32 %v1952, %v1954
      %v1956 = vmul.f32 %v1953, %v1954
      %1957 = vadd.xlane.f32.xlu0 %v1955
      %v1958 = vpop.xlane.xlu0 %1957
      %v1959 = vsel %vm310, %v1956, 0.0
      %1960 = vadd.xlane.f32.xlu0 %v1959
      %v1961 = vpop.xlane.xlu0 %1960
      %v1962 = vperm.slane %v1909, 4
      %v1963 = vadd.f32 %v1958, %v1962
      %v1964 = vadd.f32 %v1961, %v1962
      %1965 = vst.msk [vmem:[%s237] sm:$0xff] %vm341, %v1963
      %1966 = vst.msk [vmem:[%s237 + $0x8] sm:$0x3] %vm343, %v1964
      %p1967 = scmp.lt.s32.totalorder %s15, 7
      %s1968 = scalar_select %p1967, %s15, 7
      %s1969 = smul.addr %s1968, 2
      %s1970 = smul.addr %s1969, 8
      %s1971 = scalar_lea.vmem %s4, %s1970
      // Predicated region
      $region37: #{tpu_custom_call.1} parent=35 // pred_check
        %p1972 = pneg %p132
      $region38: #{tpu_custom_call.1} parent=35 // pred_check_branch
        %1974 = sbr.rel (%p1972) target = $region40
      $region39: #{tpu_custom_call.1} parent=35 // pred_region
        _
      $region40: #{tpu_custom_call.1} parent=35 // pred_fallthru
        _
    $region36: #{tpu_custom_call.1} parent=5 // pred_fallthru
      _
    %p1975 = scmp.le.s32.totalorder 2, %s10
    // Predicated region
    $region41: #{tpu_custom_call.1} parent=5 // pred_check
      %p1976 = pneg %p1975
    $region42: #{tpu_custom_call.1} parent=5 // pred_check_branch
      %1978 = sbr.rel (%p1976) target = $region44
    $region43: #{tpu_custom_call.1} parent=5 // pred_region
      %s1979 = ssub.s32 %s10, 2
      // Predicated region
      $region45: #{tpu_custom_call.1} parent=43 // pred_check
        %p1980 = pneg %p138
      $region46: #{tpu_custom_call.1} parent=43 // pred_check_branch
        %1982 = sbr.rel (%p1980) target = $region48
      $region47: #{tpu_custom_call.1} parent=43 // pred_region
        %p1983 = scmp.lt.s32.totalorder %s16, 7
        %s1984 = scalar_select %p1983, %s16, 7
        %s1985 = smul.addr %s1984, 2
        %s1986 = smul.addr %s1985, 8
        %s1987 = scalar_lea.vmem %s4, %s1986
      $region48: #{tpu_custom_call.1} parent=43 // pred_fallthru
        _
    $region44: #{tpu_custom_call.1} parent=5 // pred_fallthru
      _
  $region6: #{tpu_custom_call.1} parent=0 // loop_footer
    %s14 = sadd.s32 1, %s10
  $region7: #{tpu_custom_call.1} parent=0 // loop_footer_branch
    %9 = sbr.rel target = $region3
  $region8: #{tpu_custom_call.1} parent=0 // loop_exit
    _

</llo_original>
